<compile_context>
chip_gen: v6e
topology: v6e:2x2x1
jax: 0.10.0
libtpu: 0.0.40
codegen_flags: <defaults>
</compile_context>

<pallas_src>
import jax
import jax.numpy as jnp
import numpy as np
from jax import lax
from jax.experimental import pallas as pl
from jax.experimental.pallas import tpu as pltpu


# ----------------------------------------------------------------------------
# Fused kernel: all LSTM layers + final Linear in one invocation.
# Weight gate order inside the kernel is (i, f, o, g) along the 4H axis
# (reordered in the wrapper from PyTorch's (i, f, g, o)).
# ----------------------------------------------------------------------------
def make_fused_lstm_kernel(num_layers, T, B_pad, H):
    H3 = 3 * H
    UNROLL_T = 32  # static unroll below this; fori_loop(unroll=4) above.

    def kernel(*refs):
        x_ref = refs[0]                                   # (T*B_pad, D) bf16
        w_ih0_ref, w_hh0_ref, b0_ref = refs[1], refs[2], refs[3]
        idx = 4
        wcat_refs, b_refs = [], []
        for _ in range(num_layers - 1):                   # (2H,4H) bf16, (1,4H) f32
            wcat_refs.append(refs[idx])
            b_refs.append(refs[idx + 1])
            idx += 2
        fcw_ref, fcb_ref = refs[idx], refs[idx + 1]        # (H,O_pad), (1,O_pad) f32
        out_ref, clast_ref = refs[idx + 2], refs[idx + 3]  # (B_pad,O_pad), (B_pad,H)
        gates0_sc = refs[idx + 4]                          # (T*B_pad, 4H) f32 scratch

        # Hoisted layer-0 input projection: ONE big bf16 MXU matmul over all T,
        # f32 accumulation, off the recurrence critical path.
        gates0_sc[...] = (
            jnp.dot(x_ref[...], w_ih0_ref[...],
                    preferred_element_type=jnp.float32) + b0_ref[...])

        # Load recurrence weights once per call.
        w_hh0 = w_hh0_ref[...]                             # bf16 (H, 4H)
        w_cats = [r[...] for r in wcat_refs]               # bf16 (2H, 4H)
        biases = [r[...] for r in b_refs]                  # f32  (1, 4H)

        def cell(pre, c):
            # gate order (i, f, o, g): 1 sigmoid over 3H lanes, 1 tanh over H.
            sg = jax.nn.sigmoid(pre[:, :H3])
            g_g = jnp.tanh(pre[:, H3:])
            i_g = sg[:, 0 * H:1 * H]
            f_g = sg[:, 1 * H:2 * H]
            o_g = sg[:, 2 * H:H3]
            c_new = f_g * c + i_g * g_g
            h_new = o_g * jnp.tanh(c_new)
            return h_new, c_new

        def step(g0_t, hs, cs):
            new_hs, new_cs = [], []
            # Layer 0: precomputed input projection + h @ W_hh (bf16 operands).
            pre = g0_t + jnp.dot(hs[0].astype(jnp.bfloat16), w_hh0,
                                 preferred_element_type=jnp.float32)
            h_new, c_new = cell(pre, cs[0])
            new_hs.append(h_new)
            new_cs.append(c_new)
            # Layers >= 1: fused (h_{l-1,t} | h_{l,t-1}) @ [W_ih; W_hh] per step,
            # consuming the lower layer's output immediately (no hidden-seq scratch).
            for l in range(1, num_layers):
                inp = jnp.concatenate([new_hs[l - 1], hs[l]],
                                      axis=1).astype(jnp.bfloat16)
                pre = (jnp.dot(inp, w_cats[l - 1],
                               preferred_element_type=jnp.float32)
                       + biases[l - 1])
                h_new, c_new = cell(pre, cs[l])
                new_hs.append(h_new)
                new_cs.append(c_new)
            return new_hs, new_cs

        zeros = jnp.zeros((B_pad, H), jnp.float32)
        hs = [zeros] * num_layers
        cs = [zeros] * num_layers

        if T <= UNROLL_T:
            # Static unroll: all gate-buffer slices are static and 8-aligned.
            for t in range(T):
                g0_t = gates0_sc[t * B_pad:(t + 1) * B_pad, :]
                hs, cs = step(g0_t, hs, cs)
        else:
            def body(t, carry):
                hs_c, cs_c = carry
                r0 = pl.multiple_of(t * B_pad, B_pad)
                g0_t = gates0_sc[pl.ds(r0, B_pad), :]
                nh, nc = step(g0_t, list(hs_c), list(cs_c))
                return tuple(nh), tuple(nc)

            hs_t, cs_t = lax.fori_loop(0, T, body, (tuple(hs), tuple(cs)),
                                       unroll=4)
            hs, cs = list(hs_t), list(cs_t)

        # Final FC on out[:, -1, :] (== h of last layer after last step);
        # O is padded to a 128-lane multiple so this store is lane-dense.
        out_ref[...] = (jnp.dot(hs[-1], fcw_ref[...],
                                preferred_element_type=jnp.float32)
                        + fcb_ref[...]).astype(out_ref.dtype)
        clast_ref[...] = cs[-1].astype(clast_ref.dtype)     # last-layer c_T, once.

    return kernel


# ----------------------------------------------------------------------------
# Full model forward (matches LSTMModel.forward): returns (fc(out[:, -1, :]), c[-1])
# ----------------------------------------------------------------------------
@jax.jit
def lstm_model_forward(x, layer_params, fc_w, fc_b):
    B, T, D = x.shape
    H = layer_params[0][1].shape[0]
    O = fc_w.shape[1]
    L = len(layer_params)
    B_pad = max(8, ((B + 7) // 8) * 8)          # sublane-align the batch
    O_pad = ((O + 127) // 128) * 128            # lane-dense FC output

    # batch_first (B,T,D) -> time-major, batch-padded, flattened, bf16.
    x_tm = jnp.transpose(x, (1, 0, 2))
    x_tm = jnp.pad(x_tm, ((0, 0), (0, B_pad - B), (0, 0)))
    x2d = x_tm.reshape(T * B_pad, D).astype(jnp.bfloat16)

    def reorder(a):  # PyTorch (i, f, g, o) -> kernel (i, f, o, g) along last axis.
        i_, f_, g_, o_ = jnp.split(a, 4, axis=-1)
        return jnp.concatenate([i_, f_, o_, g_], axis=-1)

    w_ih0, w_hh0, b0 = layer_params[0]
    w_ih0 = reorder(w_ih0).astype(jnp.bfloat16)
    w_hh0 = reorder(w_hh0).astype(jnp.bfloat16)
    b0 = reorder(b0).astype(jnp.float32)

    flat = [x2d, w_ih0, w_hh0, b0]
    in_specs = [pl.BlockSpec(x2d.shape, lambda i: (0, 0)),
                pl.BlockSpec(w_ih0.shape, lambda i: (0, 0)),
                pl.BlockSpec(w_hh0.shape, lambda i: (0, 0)),
                pl.BlockSpec(b0.shape, lambda i: (0, 0))]

    for l in range(1, L):
        w_ih, w_hh, b = layer_params[l]
        # Stack [W_ih; W_hh] so layers >= 1 need a single matmul per timestep.
        w_cat = jnp.concatenate([reorder(w_ih), reorder(w_hh)],
                                axis=0).astype(jnp.bfloat16)
        b_l = reorder(b).astype(jnp.float32)
        flat += [w_cat, b_l]
        in_specs += [pl.BlockSpec(w_cat.shape, lambda i: (0, 0)),
                     pl.BlockSpec(b_l.shape, lambda i: (0, 0))]

    fc_w_p = jnp.pad(fc_w, ((0, 0), (0, O_pad - O))).astype(jnp.float32)
    fc_b_p = jnp.pad(fc_b.reshape(1, O), ((0, 0), (0, O_pad - O))).astype(jnp.float32)
    flat += [fc_w_p, fc_b_p]
    in_specs += [pl.BlockSpec(fc_w_p.shape, lambda i: (0, 0)),
                 pl.BlockSpec(fc_b_p.shape, lambda i: (0, 0))]

    # Explicit VMEM budget: operands + scratch + outputs, x2 headroom, clamped to
    # v7x's 64 MiB physical VMEM.
    total_bytes = sum(int(np.prod(a.shape)) * a.dtype.itemsize for a in flat)
    total_bytes += T * B_pad * 4 * H * 4                 # gates0 scratch (f32)
    total_bytes += B_pad * O_pad * 4 + B_pad * H * 4     # outputs
    vmem_limit = int(min(max(2 * total_bytes + (4 << 20), 32 << 20), 64 << 20))

    kernel = make_fused_lstm_kernel(L, T, B_pad, H)

    out_full, c_full = pl.pallas_call(
        kernel,
        out_shape=(jax.ShapeDtypeStruct((B_pad, O_pad), jnp.float32),
                   jax.ShapeDtypeStruct((B_pad, H), jnp.float32)),
        grid_spec=pltpu.PrefetchScalarGridSpec(
            num_scalar_prefetch=0,
            grid=(1,),
            in_specs=in_specs,
            out_specs=[pl.BlockSpec((B_pad, O_pad), lambda i: (0, 0)),
                       pl.BlockSpec((B_pad, H), lambda i: (0, 0))],
            scratch_shapes=[
                pltpu.VMEM((T * B_pad, 4 * H), jnp.float32),   # hoisted x@W_ih + b
            ]),
        compiler_params=pltpu.CompilerParams(
            dimension_semantics=("arbitrary",),
            vmem_limit_bytes=vmem_limit),
    )(*flat)

    return out_full[:B, :O], c_full[:B]


# ----------------------------------------------------------------------------
# Pure-JAX f32 reference for verification (PyTorch gate order i, f, g, o).
# ----------------------------------------------------------------------------
def ref_forward(x, layer_params, fc_w, fc_b):
    B = x.shape[0]
    inp = x
    c = None
    for (w_ih, w_hh, b) in layer_params:
        H = w_hh.shape[0]
        h = jnp.zeros((B, H), jnp.float32)
        c = jnp.zeros((B, H), jnp.float32)
        outs = []
        for t in range(inp.shape[1]):
            g = inp[:, t, :] @ w_ih + h @ w_hh + b[0]
            i_g = jax.nn.sigmoid(g[:, :H])
            f_g = jax.nn.sigmoid(g[:, H:2 * H])
            g_g = jnp.tanh(g[:, 2 * H:3 * H])
            o_g = jax.nn.sigmoid(g[:, 3 * H:])
            c = f_g * c + i_g * g_g
            h = o_g * jnp.tanh(c)
            outs.append(h)
        inp = jnp.stack(outs, axis=1)
    out = inp[:, -1, :] @ fc_w + fc_b
    return out, c


def init_params(key, input_size, hidden_size, num_layers, output_size):
    """Deterministic init mimicking PyTorch's U(-1/sqrt(H), 1/sqrt(H))."""
    bound = 1.0 / np.sqrt(hidden_size)
    layer_params = []
    for layer in range(num_layers):
        d_in = input_size if layer == 0 else hidden_size
        key, k1, k2, k3, k4 = jax.random.split(key, 5)
        # stored transposed relative to PyTorch: (d_in, 4H), (H, 4H)
        w_ih = jax.random.uniform(k1, (d_in, 4 * hidden_size), jnp.float32, -bound, bound)
        w_hh = jax.random.uniform(k2, (hidden_size, 4 * hidden_size), jnp.float32, -bound, bound)
        b_ih = jax.random.uniform(k3, (4 * hidden_size,), jnp.float32, -bound, bound)
        b_hh = jax.random.uniform(k4, (4 * hidden_size,), jnp.float32, -bound, bound)
        b = (b_ih + b_hh).reshape(1, 4 * hidden_size)
        layer_params.append((w_ih, w_hh, b))
    key, k5, k6 = jax.random.split(key, 3)
    fc_bound = 1.0 / np.sqrt(hidden_size)
    fc_w = jax.random.uniform(k5, (hidden_size, output_size), jnp.float32, -fc_bound, fc_bound)
    fc_b = jax.random.uniform(k6, (output_size,), jnp.float32, -fc_bound, fc_bound)
    return tuple(layer_params), fc_w, fc_b


if __name__ == "__main__":
    key = jax.random.PRNGKey(0)

    B, T = 2, 8
    input_size, hidden_size, num_layers, output_size = 4, 32, 2, 4

    key, kx, kp = jax.random.split(key, 3)
    x = jax.random.normal(kx, (B, T, input_size), jnp.float32)
    layer_params, fc_w, fc_b = init_params(kp, input_size, hidden_size,
                                           num_layers, output_size)

    out, c_last = lstm_model_forward(x, layer_params, fc_w, fc_b)
    out = jax.block_until_ready(out)
    c_last = jax.block_until_ready(c_last)

    ref_out, ref_c = ref_forward(x, layer_params, fc_w, fc_b)
    # bf16 matmul operands (f32 accumulation) -> tolerance relaxed vs f32 reference.
    np.testing.assert_allclose(np.asarray(out), np.asarray(ref_out), rtol=3e-2, atol=3e-2)
    np.testing.assert_allclose(np.asarray(c_last), np.asarray(ref_c), rtol=3e-2, atol=3e-2)

    assert out.shape == (B, output_size)
    assert c_last.shape == (B, hidden_size)

    print("KERNEL_OK")
</pallas_src>

<mosaic_0001>
module attributes {stable_mosaic.version = 11 : i64} {
  func.func @kernel(%arg0: i32, %arg1: memref<64x4xbf16, #tpu.memory_space<vmem>>, %arg2: memref<4x128xbf16, #tpu.memory_space<vmem>>, %arg3: memref<32x128xbf16, #tpu.memory_space<vmem>>, %arg4: memref<1x128xf32, #tpu.memory_space<vmem>>, %arg5: memref<64x128xbf16, #tpu.memory_space<vmem>>, %arg6: memref<1x128xf32, #tpu.memory_space<vmem>>, %arg7: memref<32x128xf32, #tpu.memory_space<vmem>>, %arg8: memref<1x128xf32, #tpu.memory_space<vmem>>, %arg9: memref<8x128xf32, #tpu.memory_space<vmem>>, %arg10: memref<8x32xf32, #tpu.memory_space<vmem>>, %arg11: memref<64x128xf32, #tpu.memory_space<vmem>>) attributes {dimension_semantics = [#tpu.dimension_semantics<arbitrary>], iteration_bounds = array<i64: 1>, scalar_prefetch = 0 : i64, scratch_operands = 1 : i64, tpu.core_type = #tpu.core_type<tc>, window_params = [{pipeline_mode = #tpu.pipeline_mode<synchronous>, transform_indices = @transform_0, window_bounds = array<i64: 64, 4>}, {pipeline_mode = #tpu.pipeline_mode<synchronous>, transform_indices = @transform_1, window_bounds = array<i64: 4, 128>}, {pipeline_mode = #tpu.pipeline_mode<synchronous>, transform_indices = @transform_2, window_bounds = array<i64: 32, 128>}, {pipeline_mode = #tpu.pipeline_mode<synchronous>, transform_indices = @transform_3, window_bounds = array<i64: 1, 128>}, {pipeline_mode = #tpu.pipeline_mode<synchronous>, transform_indices = @transform_4, window_bounds = array<i64: 64, 128>}, {pipeline_mode = #tpu.pipeline_mode<synchronous>, transform_indices = @transform_5, window_bounds = array<i64: 1, 128>}, {pipeline_mode = #tpu.pipeline_mode<synchronous>, transform_indices = @transform_6, window_bounds = array<i64: 32, 128>}, {pipeline_mode = #tpu.pipeline_mode<synchronous>, transform_indices = @transform_7, window_bounds = array<i64: 1, 128>}, {pipeline_mode = #tpu.pipeline_mode<synchronous>, transform_indices = @transform_8, window_bounds = array<i64: 8, 128>}, {pipeline_mode = #tpu.pipeline_mode<synchronous>, transform_indices = @transform_9, window_bounds = array<i64: 8, 32>}]} {
    %c0 = arith.constant 0 : index
    %c0_0 = arith.constant 0 : index
    %0 = vector.load %arg1[%c0, %c0_0] : memref<64x4xbf16, #tpu.memory_space<vmem>>, vector<64x4xbf16>
    %c0_1 = arith.constant 0 : index
    %c0_2 = arith.constant 0 : index
    %1 = vector.load %arg2[%c0_1, %c0_2] : memref<4x128xbf16, #tpu.memory_space<vmem>>, vector<4x128xbf16>
    %cst = arith.constant dense<0.000000e+00> : vector<64x128xf32>
    %2 = tpu.matmul %0, %1, %cst {dimension_numbers = #tpu.dot_dimension_numbers<[1], [0], [0], [1], [0, 0, 1, 1], [], []>} : vector<64x4xbf16>, vector<4x128xbf16>, vector<64x128xf32> -> vector<64x128xf32>
    %c0_3 = arith.constant 0 : index
    %c0_4 = arith.constant 0 : index
    %3 = vector.load %arg4[%c0_3, %c0_4] : memref<1x128xf32, #tpu.memory_space<vmem>>, vector<1x128xf32>
    %4 = vector.broadcast %3 : vector<1x128xf32> to vector<64x128xf32>
    %5 = arith.addf %2, %4 : vector<64x128xf32>
    %c0_5 = arith.constant 0 : index
    %c0_6 = arith.constant 0 : index
    %6 = vector.load %arg11[%c0_5, %c0_6] : memref<64x128xf32, #tpu.memory_space<vmem>>, vector<64x128xf32>
    tpu.vector_store %arg11[%c0_5, %c0_6], %5 {strides = array<i32>} : memref<64x128xf32, #tpu.memory_space<vmem>>, vector<64x128xf32>,
    %c0_7 = arith.constant 0 : index
    %c0_8 = arith.constant 0 : index
    %7 = vector.load %arg3[%c0_7, %c0_8] : memref<32x128xbf16, #tpu.memory_space<vmem>>, vector<32x128xbf16>
    %c0_9 = arith.constant 0 : index
    %c0_10 = arith.constant 0 : index
    %8 = vector.load %arg5[%c0_9, %c0_10] : memref<64x128xbf16, #tpu.memory_space<vmem>>, vector<64x128xbf16>
    %c0_11 = arith.constant 0 : index
    %c0_12 = arith.constant 0 : index
    %9 = vector.load %arg6[%c0_11, %c0_12] : memref<1x128xf32, #tpu.memory_space<vmem>>, vector<1x128xf32>
    %cst_13 = arith.constant 0.000000e+00 : f32
    %10 = vector.broadcast %cst_13 : f32 to vector<8x32xf32>
    %c0_14 = arith.constant 0 : index
    %c0_15 = arith.constant 0 : index
    %11 = vector.load %arg11[%c0_14, %c0_15] : memref<64x128xf32, #tpu.memory_space<vmem>>, vector<8x128xf32>
    %12 = arith.truncf %10 : vector<8x32xf32> to vector<8x32xbf16>
    %cst_16 = arith.constant dense<0.000000e+00> : vector<8x128xf32>
    %13 = tpu.matmul %12, %7, %cst_16 {dimension_numbers = #tpu.dot_dimension_numbers<[1], [0], [0], [1], [0, 0, 1, 1], [], []>} : vector<8x32xbf16>, vector<32x128xbf16>, vector<8x128xf32> -> vector<8x128xf32>
    %14 = arith.addf %11, %13 : vector<8x128xf32>
    %15 = vector.extract_strided_slice %14 {offsets = [0, 0], sizes = [8, 96], strides = [1, 1]} : vector<8x128xf32> to vector<8x96xf32>
    %16 = arith.negf %15 : vector<8x96xf32>
    %17 = math.exp %16 : vector<8x96xf32>
    %cst_17 = arith.constant 1.000000e+00 : f32
    %18 = vector.broadcast %cst_17 : f32 to vector<8x96xf32>
    %19 = arith.addf %18, %17 : vector<8x96xf32>
    %20 = arith.divf %18, %19 : vector<8x96xf32>
    %21 = vector.extract_strided_slice %14 {offsets = [0, 96], sizes = [8, 32], strides = [1, 1]} : vector<8x128xf32> to vector<8x32xf32>
    %22 = math.tanh %21 : vector<8x32xf32>
    %23 = vector.extract_strided_slice %20 {offsets = [0, 0], sizes = [8, 32], strides = [1, 1]} : vector<8x96xf32> to vector<8x32xf32>
    %24 = vector.extract_strided_slice %20 {offsets = [0, 32], sizes = [8, 32], strides = [1, 1]} : vector<8x96xf32> to vector<8x32xf32>
    %25 = vector.extract_strided_slice %20 {offsets = [0, 64], sizes = [8, 32], strides = [1, 1]} : vector<8x96xf32> to vector<8x32xf32>
    %26 = arith.mulf %24, %10 : vector<8x32xf32>
    %27 = arith.mulf %23, %22 : vector<8x32xf32>
    %28 = arith.addf %26, %27 : vector<8x32xf32>
    %29 = math.tanh %28 : vector<8x32xf32>
    %30 = arith.mulf %25, %29 : vector<8x32xf32>
    %31 = tpu.concatenate %30, %10 in 1 : vector<8x32xf32>, vector<8x32xf32> -> vector<8x64xf32>
    %32 = arith.truncf %31 : vector<8x64xf32> to vector<8x64xbf16>
    %cst_18 = arith.constant dense<0.000000e+00> : vector<8x128xf32>
    %33 = tpu.matmul %32, %8, %cst_18 {dimension_numbers = #tpu.dot_dimension_numbers<[1], [0], [0], [1], [0, 0, 1, 1], [], []>} : vector<8x64xbf16>, vector<64x128xbf16>, vector<8x128xf32> -> vector<8x128xf32>
    %34 = vector.broadcast %9 : vector<1x128xf32> to vector<8x128xf32>
    %35 = arith.addf %33, %34 : vector<8x128xf32>
    %36 = vector.extract_strided_slice %35 {offsets = [0, 0], sizes = [8, 96], strides = [1, 1]} : vector<8x128xf32> to vector<8x96xf32>
    %37 = arith.negf %36 : vector<8x96xf32>
    %38 = math.exp %37 : vector<8x96xf32>
    %cst_19 = arith.constant 1.000000e+00 : f32
    %39 = vector.broadcast %cst_19 : f32 to vector<8x96xf32>
    %40 = arith.addf %39, %38 : vector<8x96xf32>
    %41 = arith.divf %39, %40 : vector<8x96xf32>
    %42 = vector.extract_strided_slice %35 {offsets = [0, 96], sizes = [8, 32], strides = [1, 1]} : vector<8x128xf32> to vector<8x32xf32>
    %43 = math.tanh %42 : vector<8x32xf32>
    %44 = vector.extract_strided_slice %41 {offsets = [0, 0], sizes = [8, 32], strides = [1, 1]} : vector<8x96xf32> to vector<8x32xf32>
    %45 = vector.extract_strided_slice %41 {offsets = [0, 32], sizes = [8, 32], strides = [1, 1]} : vector<8x96xf32> to vector<8x32xf32>
    %46 = vector.extract_strided_slice %41 {offsets = [0, 64], sizes = [8, 32], strides = [1, 1]} : vector<8x96xf32> to vector<8x32xf32>
    %47 = arith.mulf %45, %10 : vector<8x32xf32>
    %48 = arith.mulf %44, %43 : vector<8x32xf32>
    %49 = arith.addf %47, %48 : vector<8x32xf32>
    %50 = math.tanh %49 : vector<8x32xf32>
    %51 = arith.mulf %46, %50 : vector<8x32xf32>
    %c8 = arith.constant 8 : index
    %c0_20 = arith.constant 0 : index
    %52 = vector.load %arg11[%c8, %c0_20] : memref<64x128xf32, #tpu.memory_space<vmem>>, vector<8x128xf32>
    %53 = arith.truncf %30 : vector<8x32xf32> to vector<8x32xbf16>
    %cst_21 = arith.constant dense<0.000000e+00> : vector<8x128xf32>
    %54 = tpu.matmul %53, %7, %cst_21 {dimension_numbers = #tpu.dot_dimension_numbers<[1], [0], [0], [1], [0, 0, 1, 1], [], []>} : vector<8x32xbf16>, vector<32x128xbf16>, vector<8x128xf32> -> vector<8x128xf32>
    %55 = arith.addf %52, %54 : vector<8x128xf32>
    %56 = vector.extract_strided_slice %55 {offsets = [0, 0], sizes = [8, 96], strides = [1, 1]} : vector<8x128xf32> to vector<8x96xf32>
    %57 = arith.negf %56 : vector<8x96xf32>
    %58 = math.exp %57 : vector<8x96xf32>
    %cst_22 = arith.constant 1.000000e+00 : f32
    %59 = vector.broadcast %cst_22 : f32 to vector<8x96xf32>
    %60 = arith.addf %59, %58 : vector<8x96xf32>
    %61 = arith.divf %59, %60 : vector<8x96xf32>
    %62 = vector.extract_strided_slice %55 {offsets = [0, 96], sizes = [8, 32], strides = [1, 1]} : vector<8x128xf32> to vector<8x32xf32>
    %63 = math.tanh %62 : vector<8x32xf32>
    %64 = vector.extract_strided_slice %61 {offsets = [0, 0], sizes = [8, 32], strides = [1, 1]} : vector<8x96xf32> to vector<8x32xf32>
    %65 = vector.extract_strided_slice %61 {offsets = [0, 32], sizes = [8, 32], strides = [1, 1]} : vector<8x96xf32> to vector<8x32xf32>
    %66 = vector.extract_strided_slice %61 {offsets = [0, 64], sizes = [8, 32], strides = [1, 1]} : vector<8x96xf32> to vector<8x32xf32>
    %67 = arith.mulf %65, %28 : vector<8x32xf32>
    %68 = arith.mulf %64, %63 : vector<8x32xf32>
    %69 = arith.addf %67, %68 : vector<8x32xf32>
    %70 = math.tanh %69 : vector<8x32xf32>
    %71 = arith.mulf %66, %70 : vector<8x32xf32>
    %72 = tpu.concatenate %71, %51 in 1 : vector<8x32xf32>, vector<8x32xf32> -> vector<8x64xf32>
    %73 = arith.truncf %72 : vector<8x64xf32> to vector<8x64xbf16>
    %cst_23 = arith.constant dense<0.000000e+00> : vector<8x128xf32>
    %74 = tpu.matmul %73, %8, %cst_23 {dimension_numbers = #tpu.dot_dimension_numbers<[1], [0], [0], [1], [0, 0, 1, 1], [], []>} : vector<8x64xbf16>, vector<64x128xbf16>, vector<8x128xf32> -> vector<8x128xf32>
    %75 = vector.broadcast %9 : vector<1x128xf32> to vector<8x128xf32>
    %76 = arith.addf %74, %75 : vector<8x128xf32>
    %77 = vector.extract_strided_slice %76 {offsets = [0, 0], sizes = [8, 96], strides = [1, 1]} : vector<8x128xf32> to vector<8x96xf32>
    %78 = arith.negf %77 : vector<8x96xf32>
    %79 = math.exp %78 : vector<8x96xf32>
    %cst_24 = arith.constant 1.000000e+00 : f32
    %80 = vector.broadcast %cst_24 : f32 to vector<8x96xf32>
    %81 = arith.addf %80, %79 : vector<8x96xf32>
    %82 = arith.divf %80, %81 : vector<8x96xf32>
    %83 = vector.extract_strided_slice %76 {offsets = [0, 96], sizes = [8, 32], strides = [1, 1]} : vector<8x128xf32> to vector<8x32xf32>
    %84 = math.tanh %83 : vector<8x32xf32>
    %85 = vector.extract_strided_slice %82 {offsets = [0, 0], sizes = [8, 32], strides = [1, 1]} : vector<8x96xf32> to vector<8x32xf32>
    %86 = vector.extract_strided_slice %82 {offsets = [0, 32], sizes = [8, 32], strides = [1, 1]} : vector<8x96xf32> to vector<8x32xf32>
    %87 = vector.extract_strided_slice %82 {offsets = [0, 64], sizes = [8, 32], strides = [1, 1]} : vector<8x96xf32> to vector<8x32xf32>
    %88 = arith.mulf %86, %49 : vector<8x32xf32>
    %89 = arith.mulf %85, %84 : vector<8x32xf32>
    %90 = arith.addf %88, %89 : vector<8x32xf32>
    %91 = math.tanh %90 : vector<8x32xf32>
    %92 = arith.mulf %87, %91 : vector<8x32xf32>
    %c16 = arith.constant 16 : index
    %c0_25 = arith.constant 0 : index
    %93 = vector.load %arg11[%c16, %c0_25] : memref<64x128xf32, #tpu.memory_space<vmem>>, vector<8x128xf32>
    %94 = arith.truncf %71 : vector<8x32xf32> to vector<8x32xbf16>
    %cst_26 = arith.constant dense<0.000000e+00> : vector<8x128xf32>
    %95 = tpu.matmul %94, %7, %cst_26 {dimension_numbers = #tpu.dot_dimension_numbers<[1], [0], [0], [1], [0, 0, 1, 1], [], []>} : vector<8x32xbf16>, vector<32x128xbf16>, vector<8x128xf32> -> vector<8x128xf32>
    %96 = arith.addf %93, %95 : vector<8x128xf32>
    %97 = vector.extract_strided_slice %96 {offsets = [0, 0], sizes = [8, 96], strides = [1, 1]} : vector<8x128xf32> to vector<8x96xf32>
    %98 = arith.negf %97 : vector<8x96xf32>
    %99 = math.exp %98 : vector<8x96xf32>
    %cst_27 = arith.constant 1.000000e+00 : f32
    %100 = vector.broadcast %cst_27 : f32 to vector<8x96xf32>
    %101 = arith.addf %100, %99 : vector<8x96xf32>
    %102 = arith.divf %100, %101 : vector<8x96xf32>
    %103 = vector.extract_strided_slice %96 {offsets = [0, 96], sizes = [8, 32], strides = [1, 1]} : vector<8x128xf32> to vector<8x32xf32>
    %104 = math.tanh %103 : vector<8x32xf32>
    %105 = vector.extract_strided_slice %102 {offsets = [0, 0], sizes = [8, 32], strides = [1, 1]} : vector<8x96xf32> to vector<8x32xf32>
    %106 = vector.extract_strided_slice %102 {offsets = [0, 32], sizes = [8, 32], strides = [1, 1]} : vector<8x96xf32> to vector<8x32xf32>
    %107 = vector.extract_strided_slice %102 {offsets = [0, 64], sizes = [8, 32], strides = [1, 1]} : vector<8x96xf32> to vector<8x32xf32>
    %108 = arith.mulf %106, %69 : vector<8x32xf32>
    %109 = arith.mulf %105, %104 : vector<8x32xf32>
    %110 = arith.addf %108, %109 : vector<8x32xf32>
    %111 = math.tanh %110 : vector<8x32xf32>
    %112 = arith.mulf %107, %111 : vector<8x32xf32>
    %113 = tpu.concatenate %112, %92 in 1 : vector<8x32xf32>, vector<8x32xf32> -> vector<8x64xf32>
    %114 = arith.truncf %113 : vector<8x64xf32> to vector<8x64xbf16>
    %cst_28 = arith.constant dense<0.000000e+00> : vector<8x128xf32>
    %115 = tpu.matmul %114, %8, %cst_28 {dimension_numbers = #tpu.dot_dimension_numbers<[1], [0], [0], [1], [0, 0, 1, 1], [], []>} : vector<8x64xbf16>, vector<64x128xbf16>, vector<8x128xf32> -> vector<8x128xf32>
    %116 = vector.broadcast %9 : vector<1x128xf32> to vector<8x128xf32>
    %117 = arith.addf %115, %116 : vector<8x128xf32>
    %118 = vector.extract_strided_slice %117 {offsets = [0, 0], sizes = [8, 96], strides = [1, 1]} : vector<8x128xf32> to vector<8x96xf32>
    %119 = arith.negf %118 : vector<8x96xf32>
    %120 = math.exp %119 : vector<8x96xf32>
    %cst_29 = arith.constant 1.000000e+00 : f32
    %121 = vector.broadcast %cst_29 : f32 to vector<8x96xf32>
    %122 = arith.addf %121, %120 : vector<8x96xf32>
    %123 = arith.divf %121, %122 : vector<8x96xf32>
    %124 = vector.extract_strided_slice %117 {offsets = [0, 96], sizes = [8, 32], strides = [1, 1]} : vector<8x128xf32> to vector<8x32xf32>
    %125 = math.tanh %124 : vector<8x32xf32>
    %126 = vector.extract_strided_slice %123 {offsets = [0, 0], sizes = [8, 32], strides = [1, 1]} : vector<8x96xf32> to vector<8x32xf32>
    %127 = vector.extract_strided_slice %123 {offsets = [0, 32], sizes = [8, 32], strides = [1, 1]} : vector<8x96xf32> to vector<8x32xf32>
    %128 = vector.extract_strided_slice %123 {offsets = [0, 64], sizes = [8, 32], strides = [1, 1]} : vector<8x96xf32> to vector<8x32xf32>
    %129 = arith.mulf %127, %90 : vector<8x32xf32>
    %130 = arith.mulf %126, %125 : vector<8x32xf32>
    %131 = arith.addf %129, %130 : vector<8x32xf32>
    %132 = math.tanh %131 : vector<8x32xf32>
    %133 = arith.mulf %128, %132 : vector<8x32xf32>
    %c24 = arith.constant 24 : index
    %c0_30 = arith.constant 0 : index
    %134 = vector.load %arg11[%c24, %c0_30] : memref<64x128xf32, #tpu.memory_space<vmem>>, vector<8x128xf32>
    %135 = arith.truncf %112 : vector<8x32xf32> to vector<8x32xbf16>
    %cst_31 = arith.constant dense<0.000000e+00> : vector<8x128xf32>
    %136 = tpu.matmul %135, %7, %cst_31 {dimension_numbers = #tpu.dot_dimension_numbers<[1], [0], [0], [1], [0, 0, 1, 1], [], []>} : vector<8x32xbf16>, vector<32x128xbf16>, vector<8x128xf32> -> vector<8x128xf32>
    %137 = arith.addf %134, %136 : vector<8x128xf32>
    %138 = vector.extract_strided_slice %137 {offsets = [0, 0], sizes = [8, 96], strides = [1, 1]} : vector<8x128xf32> to vector<8x96xf32>
    %139 = arith.negf %138 : vector<8x96xf32>
    %140 = math.exp %139 : vector<8x96xf32>
    %cst_32 = arith.constant 1.000000e+00 : f32
    %141 = vector.broadcast %cst_32 : f32 to vector<8x96xf32>
    %142 = arith.addf %141, %140 : vector<8x96xf32>
    %143 = arith.divf %141, %142 : vector<8x96xf32>
    %144 = vector.extract_strided_slice %137 {offsets = [0, 96], sizes = [8, 32], strides = [1, 1]} : vector<8x128xf32> to vector<8x32xf32>
    %145 = math.tanh %144 : vector<8x32xf32>
    %146 = vector.extract_strided_slice %143 {offsets = [0, 0], sizes = [8, 32], strides = [1, 1]} : vector<8x96xf32> to vector<8x32xf32>
    %147 = vector.extract_strided_slice %143 {offsets = [0, 32], sizes = [8, 32], strides = [1, 1]} : vector<8x96xf32> to vector<8x32xf32>
    %148 = vector.extract_strided_slice %143 {offsets = [0, 64], sizes = [8, 32], strides = [1, 1]} : vector<8x96xf32> to vector<8x32xf32>
    %149 = arith.mulf %147, %110 : vector<8x32xf32>
    %150 = arith.mulf %146, %145 : vector<8x32xf32>
    %151 = arith.addf %149, %150 : vector<8x32xf32>
    %152 = math.tanh %151 : vector<8x32xf32>
    %153 = arith.mulf %148, %152 : vector<8x32xf32>
    %154 = tpu.concatenate %153, %133 in 1 : vector<8x32xf32>, vector<8x32xf32> -> vector<8x64xf32>
    %155 = arith.truncf %154 : vector<8x64xf32> to vector<8x64xbf16>
    %cst_33 = arith.constant dense<0.000000e+00> : vector<8x128xf32>
    %156 = tpu.matmul %155, %8, %cst_33 {dimension_numbers = #tpu.dot_dimension_numbers<[1], [0], [0], [1], [0, 0, 1, 1], [], []>} : vector<8x64xbf16>, vector<64x128xbf16>, vector<8x128xf32> -> vector<8x128xf32>
    %157 = vector.broadcast %9 : vector<1x128xf32> to vector<8x128xf32>
    %158 = arith.addf %156, %157 : vector<8x128xf32>
    %159 = vector.extract_strided_slice %158 {offsets = [0, 0], sizes = [8, 96], strides = [1, 1]} : vector<8x128xf32> to vector<8x96xf32>
    %160 = arith.negf %159 : vector<8x96xf32>
    %161 = math.exp %160 : vector<8x96xf32>
    %cst_34 = arith.constant 1.000000e+00 : f32
    %162 = vector.broadcast %cst_34 : f32 to vector<8x96xf32>
    %163 = arith.addf %162, %161 : vector<8x96xf32>
    %164 = arith.divf %162, %163 : vector<8x96xf32>
    %165 = vector.extract_strided_slice %158 {offsets = [0, 96], sizes = [8, 32], strides = [1, 1]} : vector<8x128xf32> to vector<8x32xf32>
    %166 = math.tanh %165 : vector<8x32xf32>
    %167 = vector.extract_strided_slice %164 {offsets = [0, 0], sizes = [8, 32], strides = [1, 1]} : vector<8x96xf32> to vector<8x32xf32>
    %168 = vector.extract_strided_slice %164 {offsets = [0, 32], sizes = [8, 32], strides = [1, 1]} : vector<8x96xf32> to vector<8x32xf32>
    %169 = vector.extract_strided_slice %164 {offsets = [0, 64], sizes = [8, 32], strides = [1, 1]} : vector<8x96xf32> to vector<8x32xf32>
    %170 = arith.mulf %168, %131 : vector<8x32xf32>
    %171 = arith.mulf %167, %166 : vector<8x32xf32>
    %172 = arith.addf %170, %171 : vector<8x32xf32>
    %173 = math.tanh %172 : vector<8x32xf32>
    %174 = arith.mulf %169, %173 : vector<8x32xf32>
    %c32 = arith.constant 32 : index
    %c0_35 = arith.constant 0 : index
    %175 = vector.load %arg11[%c32, %c0_35] : memref<64x128xf32, #tpu.memory_space<vmem>>, vector<8x128xf32>
    %176 = arith.truncf %153 : vector<8x32xf32> to vector<8x32xbf16>
    %cst_36 = arith.constant dense<0.000000e+00> : vector<8x128xf32>
    %177 = tpu.matmul %176, %7, %cst_36 {dimension_numbers = #tpu.dot_dimension_numbers<[1], [0], [0], [1], [0, 0, 1, 1], [], []>} : vector<8x32xbf16>, vector<32x128xbf16>, vector<8x128xf32> -> vector<8x128xf32>
    %178 = arith.addf %175, %177 : vector<8x128xf32>
    %179 = vector.extract_strided_slice %178 {offsets = [0, 0], sizes = [8, 96], strides = [1, 1]} : vector<8x128xf32> to vector<8x96xf32>
    %180 = arith.negf %179 : vector<8x96xf32>
    %181 = math.exp %180 : vector<8x96xf32>
    %cst_37 = arith.constant 1.000000e+00 : f32
    %182 = vector.broadcast %cst_37 : f32 to vector<8x96xf32>
    %183 = arith.addf %182, %181 : vector<8x96xf32>
    %184 = arith.divf %182, %183 : vector<8x96xf32>
    %185 = vector.extract_strided_slice %178 {offsets = [0, 96], sizes = [8, 32], strides = [1, 1]} : vector<8x128xf32> to vector<8x32xf32>
    %186 = math.tanh %185 : vector<8x32xf32>
    %187 = vector.extract_strided_slice %184 {offsets = [0, 0], sizes = [8, 32], strides = [1, 1]} : vector<8x96xf32> to vector<8x32xf32>
    %188 = vector.extract_strided_slice %184 {offsets = [0, 32], sizes = [8, 32], strides = [1, 1]} : vector<8x96xf32> to vector<8x32xf32>
    %189 = vector.extract_strided_slice %184 {offsets = [0, 64], sizes = [8, 32], strides = [1, 1]} : vector<8x96xf32> to vector<8x32xf32>
    %190 = arith.mulf %188, %151 : vector<8x32xf32>
    %191 = arith.mulf %187, %186 : vector<8x32xf32>
    %192 = arith.addf %190, %191 : vector<8x32xf32>
    %193 = math.tanh %192 : vector<8x32xf32>
    %194 = arith.mulf %189, %193 : vector<8x32xf32>
    %195 = tpu.concatenate %194, %174 in 1 : vector<8x32xf32>, vector<8x32xf32> -> vector<8x64xf32>
    %196 = arith.truncf %195 : vector<8x64xf32> to vector<8x64xbf16>
    %cst_38 = arith.constant dense<0.000000e+00> : vector<8x128xf32>
    %197 = tpu.matmul %196, %8, %cst_38 {dimension_numbers = #tpu.dot_dimension_numbers<[1], [0], [0], [1], [0, 0, 1, 1], [], []>} : vector<8x64xbf16>, vector<64x128xbf16>, vector<8x128xf32> -> vector<8x128xf32>
    %198 = vector.broadcast %9 : vector<1x128xf32> to vector<8x128xf32>
    %199 = arith.addf %197, %198 : vector<8x128xf32>
    %200 = vector.extract_strided_slice %199 {offsets = [0, 0], sizes = [8, 96], strides = [1, 1]} : vector<8x128xf32> to vector<8x96xf32>
    %201 = arith.negf %200 : vector<8x96xf32>
    %202 = math.exp %201 : vector<8x96xf32>
    %cst_39 = arith.constant 1.000000e+00 : f32
    %203 = vector.broadcast %cst_39 : f32 to vector<8x96xf32>
    %204 = arith.addf %203, %202 : vector<8x96xf32>
    %205 = arith.divf %203, %204 : vector<8x96xf32>
    %206 = vector.extract_strided_slice %199 {offsets = [0, 96], sizes = [8, 32], strides = [1, 1]} : vector<8x128xf32> to vector<8x32xf32>
    %207 = math.tanh %206 : vector<8x32xf32>
    %208 = vector.extract_strided_slice %205 {offsets = [0, 0], sizes = [8, 32], strides = [1, 1]} : vector<8x96xf32> to vector<8x32xf32>
    %209 = vector.extract_strided_slice %205 {offsets = [0, 32], sizes = [8, 32], strides = [1, 1]} : vector<8x96xf32> to vector<8x32xf32>
    %210 = vector.extract_strided_slice %205 {offsets = [0, 64], sizes = [8, 32], strides = [1, 1]} : vector<8x96xf32> to vector<8x32xf32>
    %211 = arith.mulf %209, %172 : vector<8x32xf32>
    %212 = arith.mulf %208, %207 : vector<8x32xf32>
    %213 = arith.addf %211, %212 : vector<8x32xf32>
    %214 = math.tanh %213 : vector<8x32xf32>
    %215 = arith.mulf %210, %214 : vector<8x32xf32>
    %c40 = arith.constant 40 : index
    %c0_40 = arith.constant 0 : index
    %216 = vector.load %arg11[%c40, %c0_40] : memref<64x128xf32, #tpu.memory_space<vmem>>, vector<8x128xf32>
    %217 = arith.truncf %194 : vector<8x32xf32> to vector<8x32xbf16>
    %cst_41 = arith.constant dense<0.000000e+00> : vector<8x128xf32>
    %218 = tpu.matmul %217, %7, %cst_41 {dimension_numbers = #tpu.dot_dimension_numbers<[1], [0], [0], [1], [0, 0, 1, 1], [], []>} : vector<8x32xbf16>, vector<32x128xbf16>, vector<8x128xf32> -> vector<8x128xf32>
    %219 = arith.addf %216, %218 : vector<8x128xf32>
    %220 = vector.extract_strided_slice %219 {offsets = [0, 0], sizes = [8, 96], strides = [1, 1]} : vector<8x128xf32> to vector<8x96xf32>
    %221 = arith.negf %220 : vector<8x96xf32>
    %222 = math.exp %221 : vector<8x96xf32>
    %cst_42 = arith.constant 1.000000e+00 : f32
    %223 = vector.broadcast %cst_42 : f32 to vector<8x96xf32>
    %224 = arith.addf %223, %222 : vector<8x96xf32>
    %225 = arith.divf %223, %224 : vector<8x96xf32>
    %226 = vector.extract_strided_slice %219 {offsets = [0, 96], sizes = [8, 32], strides = [1, 1]} : vector<8x128xf32> to vector<8x32xf32>
    %227 = math.tanh %226 : vector<8x32xf32>
    %228 = vector.extract_strided_slice %225 {offsets = [0, 0], sizes = [8, 32], strides = [1, 1]} : vector<8x96xf32> to vector<8x32xf32>
    %229 = vector.extract_strided_slice %225 {offsets = [0, 32], sizes = [8, 32], strides = [1, 1]} : vector<8x96xf32> to vector<8x32xf32>
    %230 = vector.extract_strided_slice %225 {offsets = [0, 64], sizes = [8, 32], strides = [1, 1]} : vector<8x96xf32> to vector<8x32xf32>
    %231 = arith.mulf %229, %192 : vector<8x32xf32>
    %232 = arith.mulf %228, %227 : vector<8x32xf32>
    %233 = arith.addf %231, %232 : vector<8x32xf32>
    %234 = math.tanh %233 : vector<8x32xf32>
    %235 = arith.mulf %230, %234 : vector<8x32xf32>
    %236 = tpu.concatenate %235, %215 in 1 : vector<8x32xf32>, vector<8x32xf32> -> vector<8x64xf32>
    %237 = arith.truncf %236 : vector<8x64xf32> to vector<8x64xbf16>
    %cst_43 = arith.constant dense<0.000000e+00> : vector<8x128xf32>
    %238 = tpu.matmul %237, %8, %cst_43 {dimension_numbers = #tpu.dot_dimension_numbers<[1], [0], [0], [1], [0, 0, 1, 1], [], []>} : vector<8x64xbf16>, vector<64x128xbf16>, vector<8x128xf32> -> vector<8x128xf32>
    %239 = vector.broadcast %9 : vector<1x128xf32> to vector<8x128xf32>
    %240 = arith.addf %238, %239 : vector<8x128xf32>
    %241 = vector.extract_strided_slice %240 {offsets = [0, 0], sizes = [8, 96], strides = [1, 1]} : vector<8x128xf32> to vector<8x96xf32>
    %242 = arith.negf %241 : vector<8x96xf32>
    %243 = math.exp %242 : vector<8x96xf32>
    %cst_44 = arith.constant 1.000000e+00 : f32
    %244 = vector.broadcast %cst_44 : f32 to vector<8x96xf32>
    %245 = arith.addf %244, %243 : vector<8x96xf32>
    %246 = arith.divf %244, %245 : vector<8x96xf32>
    %247 = vector.extract_strided_slice %240 {offsets = [0, 96], sizes = [8, 32], strides = [1, 1]} : vector<8x128xf32> to vector<8x32xf32>
    %248 = math.tanh %247 : vector<8x32xf32>
    %249 = vector.extract_strided_slice %246 {offsets = [0, 0], sizes = [8, 32], strides = [1, 1]} : vector<8x96xf32> to vector<8x32xf32>
    %250 = vector.extract_strided_slice %246 {offsets = [0, 32], sizes = [8, 32], strides = [1, 1]} : vector<8x96xf32> to vector<8x32xf32>
    %251 = vector.extract_strided_slice %246 {offsets = [0, 64], sizes = [8, 32], strides = [1, 1]} : vector<8x96xf32> to vector<8x32xf32>
    %252 = arith.mulf %250, %213 : vector<8x32xf32>
    %253 = arith.mulf %249, %248 : vector<8x32xf32>
    %254 = arith.addf %252, %253 : vector<8x32xf32>
    %255 = math.tanh %254 : vector<8x32xf32>
    %256 = arith.mulf %251, %255 : vector<8x32xf32>
    %c48 = arith.constant 48 : index
    %c0_45 = arith.constant 0 : index
    %257 = vector.load %arg11[%c48, %c0_45] : memref<64x128xf32, #tpu.memory_space<vmem>>, vector<8x128xf32>
    %258 = arith.truncf %235 : vector<8x32xf32> to vector<8x32xbf16>
    %cst_46 = arith.constant dense<0.000000e+00> : vector<8x128xf32>
    %259 = tpu.matmul %258, %7, %cst_46 {dimension_numbers = #tpu.dot_dimension_numbers<[1], [0], [0], [1], [0, 0, 1, 1], [], []>} : vector<8x32xbf16>, vector<32x128xbf16>, vector<8x128xf32> -> vector<8x128xf32>
    %260 = arith.addf %257, %259 : vector<8x128xf32>
    %261 = vector.extract_strided_slice %260 {offsets = [0, 0], sizes = [8, 96], strides = [1, 1]} : vector<8x128xf32> to vector<8x96xf32>
    %262 = arith.negf %261 : vector<8x96xf32>
    %263 = math.exp %262 : vector<8x96xf32>
    %cst_47 = arith.constant 1.000000e+00 : f32
    %264 = vector.broadcast %cst_47 : f32 to vector<8x96xf32>
    %265 = arith.addf %264, %263 : vector<8x96xf32>
    %266 = arith.divf %264, %265 : vector<8x96xf32>
    %267 = vector.extract_strided_slice %260 {offsets = [0, 96], sizes = [8, 32], strides = [1, 1]} : vector<8x128xf32> to vector<8x32xf32>
    %268 = math.tanh %267 : vector<8x32xf32>
    %269 = vector.extract_strided_slice %266 {offsets = [0, 0], sizes = [8, 32], strides = [1, 1]} : vector<8x96xf32> to vector<8x32xf32>
    %270 = vector.extract_strided_slice %266 {offsets = [0, 32], sizes = [8, 32], strides = [1, 1]} : vector<8x96xf32> to vector<8x32xf32>
    %271 = vector.extract_strided_slice %266 {offsets = [0, 64], sizes = [8, 32], strides = [1, 1]} : vector<8x96xf32> to vector<8x32xf32>
    %272 = arith.mulf %270, %233 : vector<8x32xf32>
    %273 = arith.mulf %269, %268 : vector<8x32xf32>
    %274 = arith.addf %272, %273 : vector<8x32xf32>
    %275 = math.tanh %274 : vector<8x32xf32>
    %276 = arith.mulf %271, %275 : vector<8x32xf32>
    %277 = tpu.concatenate %276, %256 in 1 : vector<8x32xf32>, vector<8x32xf32> -> vector<8x64xf32>
    %278 = arith.truncf %277 : vector<8x64xf32> to vector<8x64xbf16>
    %cst_48 = arith.constant dense<0.000000e+00> : vector<8x128xf32>
    %279 = tpu.matmul %278, %8, %cst_48 {dimension_numbers = #tpu.dot_dimension_numbers<[1], [0], [0], [1], [0, 0, 1, 1], [], []>} : vector<8x64xbf16>, vector<64x128xbf16>, vector<8x128xf32> -> vector<8x128xf32>
    %280 = vector.broadcast %9 : vector<1x128xf32> to vector<8x128xf32>
    %281 = arith.addf %279, %280 : vector<8x128xf32>
    %282 = vector.extract_strided_slice %281 {offsets = [0, 0], sizes = [8, 96], strides = [1, 1]} : vector<8x128xf32> to vector<8x96xf32>
    %283 = arith.negf %282 : vector<8x96xf32>
    %284 = math.exp %283 : vector<8x96xf32>
    %cst_49 = arith.constant 1.000000e+00 : f32
    %285 = vector.broadcast %cst_49 : f32 to vector<8x96xf32>
    %286 = arith.addf %285, %284 : vector<8x96xf32>
    %287 = arith.divf %285, %286 : vector<8x96xf32>
    %288 = vector.extract_strided_slice %281 {offsets = [0, 96], sizes = [8, 32], strides = [1, 1]} : vector<8x128xf32> to vector<8x32xf32>
    %289 = math.tanh %288 : vector<8x32xf32>
    %290 = vector.extract_strided_slice %287 {offsets = [0, 0], sizes = [8, 32], strides = [1, 1]} : vector<8x96xf32> to vector<8x32xf32>
    %291 = vector.extract_strided_slice %287 {offsets = [0, 32], sizes = [8, 32], strides = [1, 1]} : vector<8x96xf32> to vector<8x32xf32>
    %292 = vector.extract_strided_slice %287 {offsets = [0, 64], sizes = [8, 32], strides = [1, 1]} : vector<8x96xf32> to vector<8x32xf32>
    %293 = arith.mulf %291, %254 : vector<8x32xf32>
    %294 = arith.mulf %290, %289 : vector<8x32xf32>
    %295 = arith.addf %293, %294 : vector<8x32xf32>
    %296 = math.tanh %295 : vector<8x32xf32>
    %297 = arith.mulf %292, %296 : vector<8x32xf32>
    %c56 = arith.constant 56 : index
    %c0_50 = arith.constant 0 : index
    %298 = vector.load %arg11[%c56, %c0_50] : memref<64x128xf32, #tpu.memory_space<vmem>>, vector<8x128xf32>
    %299 = arith.truncf %276 : vector<8x32xf32> to vector<8x32xbf16>
    %cst_51 = arith.constant dense<0.000000e+00> : vector<8x128xf32>
    %300 = tpu.matmul %299, %7, %cst_51 {dimension_numbers = #tpu.dot_dimension_numbers<[1], [0], [0], [1], [0, 0, 1, 1], [], []>} : vector<8x32xbf16>, vector<32x128xbf16>, vector<8x128xf32> -> vector<8x128xf32>
    %301 = arith.addf %298, %300 : vector<8x128xf32>
    %302 = vector.extract_strided_slice %301 {offsets = [0, 0], sizes = [8, 96], strides = [1, 1]} : vector<8x128xf32> to vector<8x96xf32>
    %303 = arith.negf %302 : vector<8x96xf32>
    %304 = math.exp %303 : vector<8x96xf32>
    %cst_52 = arith.constant 1.000000e+00 : f32
    %305 = vector.broadcast %cst_52 : f32 to vector<8x96xf32>
    %306 = arith.addf %305, %304 : vector<8x96xf32>
    %307 = arith.divf %305, %306 : vector<8x96xf32>
    %308 = vector.extract_strided_slice %301 {offsets = [0, 96], sizes = [8, 32], strides = [1, 1]} : vector<8x128xf32> to vector<8x32xf32>
    %309 = math.tanh %308 : vector<8x32xf32>
    %310 = vector.extract_strided_slice %307 {offsets = [0, 0], sizes = [8, 32], strides = [1, 1]} : vector<8x96xf32> to vector<8x32xf32>
    %311 = vector.extract_strided_slice %307 {offsets = [0, 32], sizes = [8, 32], strides = [1, 1]} : vector<8x96xf32> to vector<8x32xf32>
    %312 = vector.extract_strided_slice %307 {offsets = [0, 64], sizes = [8, 32], strides = [1, 1]} : vector<8x96xf32> to vector<8x32xf32>
    %313 = arith.mulf %311, %274 : vector<8x32xf32>
    %314 = arith.mulf %310, %309 : vector<8x32xf32>
    %315 = arith.addf %313, %314 : vector<8x32xf32>
    %316 = math.tanh %315 : vector<8x32xf32>
    %317 = arith.mulf %312, %316 : vector<8x32xf32>
    %318 = tpu.concatenate %317, %297 in 1 : vector<8x32xf32>, vector<8x32xf32> -> vector<8x64xf32>
    %319 = arith.truncf %318 : vector<8x64xf32> to vector<8x64xbf16>
    %cst_53 = arith.constant dense<0.000000e+00> : vector<8x128xf32>
    %320 = tpu.matmul %319, %8, %cst_53 {dimension_numbers = #tpu.dot_dimension_numbers<[1], [0], [0], [1], [0, 0, 1, 1], [], []>} : vector<8x64xbf16>, vector<64x128xbf16>, vector<8x128xf32> -> vector<8x128xf32>
    %321 = vector.broadcast %9 : vector<1x128xf32> to vector<8x128xf32>
    %322 = arith.addf %320, %321 : vector<8x128xf32>
    %323 = vector.extract_strided_slice %322 {offsets = [0, 0], sizes = [8, 96], strides = [1, 1]} : vector<8x128xf32> to vector<8x96xf32>
    %324 = arith.negf %323 : vector<8x96xf32>
    %325 = math.exp %324 : vector<8x96xf32>
    %cst_54 = arith.constant 1.000000e+00 : f32
    %326 = vector.broadcast %cst_54 : f32 to vector<8x96xf32>
    %327 = arith.addf %326, %325 : vector<8x96xf32>
    %328 = arith.divf %326, %327 : vector<8x96xf32>
    %329 = vector.extract_strided_slice %322 {offsets = [0, 96], sizes = [8, 32], strides = [1, 1]} : vector<8x128xf32> to vector<8x32xf32>
    %330 = math.tanh %329 : vector<8x32xf32>
    %331 = vector.extract_strided_slice %328 {offsets = [0, 0], sizes = [8, 32], strides = [1, 1]} : vector<8x96xf32> to vector<8x32xf32>
    %332 = vector.extract_strided_slice %328 {offsets = [0, 32], sizes = [8, 32], strides = [1, 1]} : vector<8x96xf32> to vector<8x32xf32>
    %333 = vector.extract_strided_slice %328 {offsets = [0, 64], sizes = [8, 32], strides = [1, 1]} : vector<8x96xf32> to vector<8x32xf32>
    %334 = arith.mulf %332, %295 : vector<8x32xf32>
    %335 = arith.mulf %331, %330 : vector<8x32xf32>
    %336 = arith.addf %334, %335 : vector<8x32xf32>
    %337 = math.tanh %336 : vector<8x32xf32>
    %338 = arith.mulf %333, %337 : vector<8x32xf32>
    %c0_55 = arith.constant 0 : index
    %c0_56 = arith.constant 0 : index
    %339 = vector.load %arg7[%c0_55, %c0_56] : memref<32x128xf32, #tpu.memory_space<vmem>>, vector<32x128xf32>
    %cst_57 = arith.constant dense<0.000000e+00> : vector<8x128xf32>
    %340 = tpu.matmul %338, %339, %cst_57 {dimension_numbers = #tpu.dot_dimension_numbers<[1], [0], [0], [1], [0, 0, 1, 1], [], []>} : vector<8x32xf32>, vector<32x128xf32>, vector<8x128xf32> -> vector<8x128xf32>
    %c0_58 = arith.constant 0 : index
    %c0_59 = arith.constant 0 : index
    %341 = vector.load %arg8[%c0_58, %c0_59] : memref<1x128xf32, #tpu.memory_space<vmem>>, vector<1x128xf32>
    %342 = vector.broadcast %341 : vector<1x128xf32> to vector<8x128xf32>
    %343 = arith.addf %340, %342 : vector<8x128xf32>
    %c0_60 = arith.constant 0 : index
    %c0_61 = arith.constant 0 : index
    %344 = vector.load %arg9[%c0_60, %c0_61] : memref<8x128xf32, #tpu.memory_space<vmem>>, vector<8x128xf32>
    tpu.vector_store %arg9[%c0_60, %c0_61], %343 {strides = array<i32>} : memref<8x128xf32, #tpu.memory_space<vmem>>, vector<8x128xf32>,
    %c0_62 = arith.constant 0 : index
    %c0_63 = arith.constant 0 : index
    %345 = vector.load %arg10[%c0_62, %c0_63] : memref<8x32xf32, #tpu.memory_space<vmem>>, vector<8x32xf32>
    tpu.vector_store %arg10[%c0_62, %c0_63], %336 {strides = array<i32>} : memref<8x32xf32, #tpu.memory_space<vmem>>, vector<8x32xf32>,
    return
  }
  func.func @transform_0(%arg0: i32) -> (i32, i32) {
    %c0_i32 = arith.constant 0 : i32
    %c0_i32_0 = arith.constant 0 : i32
    %c0_i32_1 = arith.constant 0 : i32
    return %c0_i32, %c0_i32_0 : i32, i32
  }
  func.func @transform_1(%arg0: i32) -> (i32, i32) {
    %c0_i32 = arith.constant 0 : i32
    %c0_i32_0 = arith.constant 0 : i32
    %c0_i32_1 = arith.constant 0 : i32
    return %c0_i32, %c0_i32_0 : i32, i32
  }
  func.func @transform_2(%arg0: i32) -> (i32, i32) {
    %c0_i32 = arith.constant 0 : i32
    %c0_i32_0 = arith.constant 0 : i32
    %c0_i32_1 = arith.constant 0 : i32
    return %c0_i32, %c0_i32_0 : i32, i32
  }
  func.func @transform_3(%arg0: i32) -> (i32, i32) {
    %c0_i32 = arith.constant 0 : i32
    %c0_i32_0 = arith.constant 0 : i32
    %c0_i32_1 = arith.constant 0 : i32
    return %c0_i32, %c0_i32_0 : i32, i32
  }
  func.func @transform_4(%arg0: i32) -> (i32, i32) {
    %c0_i32 = arith.constant 0 : i32
    %c0_i32_0 = arith.constant 0 : i32
    %c0_i32_1 = arith.constant 0 : i32
    return %c0_i32, %c0_i32_0 : i32, i32
  }
  func.func @transform_5(%arg0: i32) -> (i32, i32) {
    %c0_i32 = arith.constant 0 : i32
    %c0_i32_0 = arith.constant 0 : i32
    %c0_i32_1 = arith.constant 0 : i32
    return %c0_i32, %c0_i32_0 : i32, i32
  }
  func.func @transform_6(%arg0: i32) -> (i32, i32) {
    %c0_i32 = arith.constant 0 : i32
    %c0_i32_0 = arith.constant 0 : i32
    %c0_i32_1 = arith.constant 0 : i32
    return %c0_i32, %c0_i32_0 : i32, i32
  }
  func.func @transform_7(%arg0: i32) -> (i32, i32) {
    %c0_i32 = arith.constant 0 : i32
    %c0_i32_0 = arith.constant 0 : i32
    %c0_i32_1 = arith.constant 0 : i32
    return %c0_i32, %c0_i32_0 : i32, i32
  }
  func.func @transform_8(%arg0: i32) -> (i32, i32) {
    %c0_i32 = arith.constant 0 : i32
    %c0_i32_0 = arith.constant 0 : i32
    %c0_i32_1 = arith.constant 0 : i32
    return %c0_i32, %c0_i32_0 : i32, i32
  }
  func.func @transform_9(%arg0: i32) -> (i32, i32) {
    %c0_i32 = arith.constant 0 : i32
    %c0_i32_0 = arith.constant 0 : i32
    %c0_i32_1 = arith.constant 0 : i32
    return %c0_i32, %c0_i32_0 : i32, i32
  }
}

</mosaic_0001>

<llo_original>
// kernel: lstm_model_forward.1
$region0: #{lstm_model_forward.1}
  #allocation0 [shape = 'u32[]', space=smem, size = 0x4, offset = 0x4, fixed_abs, tag = 'smem constant byte address 0x4 - core index']
  #allocation1 [shape = 'u32[144,128]{1,0:T(1,128)}', space=vmem, size = 0x12000, scoped, tag = 'internal scratch']
  #allocation2 [shape = 'f32[64,128]{1,0:T(8,128)}', space=vmem, size = 0x8000, scoped, tag = 'scratch operand']
  %s0 = inlined_call_operand.vmem [shape: bf16[64,4], index: 0, kind: input, shape index: {}]
  %s1 = inlined_call_operand.vmem [shape: bf16[4,128], index: 1, kind: input, shape index: {}]
  %s2 = inlined_call_operand.vmem [shape: bf16[32,128], index: 2, kind: input, shape index: {}]
  %s3 = inlined_call_operand.vmem [shape: f32[1,128], index: 3, kind: input, shape index: {}]
  %s4 = inlined_call_operand.vmem [shape: bf16[64,128], index: 4, kind: input, shape index: {}]
  %s5 = inlined_call_operand.vmem [shape: f32[1,128], index: 5, kind: input, shape index: {}]
  %s6 = inlined_call_operand.vmem [shape: f32[32,128], index: 6, kind: input, shape index: {}]
  %s7 = inlined_call_operand.vmem [shape: f32[1,128], index: 7, kind: input, shape index: {}]
  %s8 = inlined_call_operand.vmem [shape: f32[8,128], index: 8, kind: output, shape index: {0}]
  %s9 = inlined_call_operand.vmem [shape: f32[8,32], index: 9, kind: output, shape index: {1}]
  %10 = xla_tuple %s8, %s9
  %s11 = sld [smem:[#allocation0]]
  $region50: #{lstm_model_forward.1} parent=0
    _
  %s13 = ssub.s32 1, %s11
  %s14 = scalar_select 0, %s13, %s11
  // Predicated region
  $region2: #{lstm_model_forward.1} parent=0 // pred_check
    _
  $region3: #{lstm_model_forward.1} parent=0 // pred_check_branch
    %16 = sbr.rel (0) target = $region5
  $region4: #{lstm_model_forward.1} parent=0 // pred_region
    _
  $region5: #{lstm_model_forward.1} parent=0 // pred_fallthru
    _
  // Predicated region
  $region6: #{lstm_model_forward.1} parent=0 // pred_check
    _
  $region7: #{lstm_model_forward.1} parent=0 // pred_check_branch
    %18 = sbr.rel (0) target = $region9
  $region8: #{lstm_model_forward.1} parent=0 // pred_region
    _
  $region9: #{lstm_model_forward.1} parent=0 // pred_fallthru
    _
  // Predicated region
  $region10: #{lstm_model_forward.1} parent=0 // pred_check
    _
  $region11: #{lstm_model_forward.1} parent=0 // pred_check_branch
    %20 = sbr.rel (0) target = $region13
  $region12: #{lstm_model_forward.1} parent=0 // pred_region
    _
  $region13: #{lstm_model_forward.1} parent=0 // pred_fallthru
    _
  // Predicated region
  $region14: #{lstm_model_forward.1} parent=0 // pred_check
    _
  $region15: #{lstm_model_forward.1} parent=0 // pred_check_branch
    %22 = sbr.rel (0) target = $region17
  $region16: #{lstm_model_forward.1} parent=0 // pred_region
    _
  $region17: #{lstm_model_forward.1} parent=0 // pred_fallthru
    _
  // Predicated region
  $region18: #{lstm_model_forward.1} parent=0 // pred_check
    _
  $region19: #{lstm_model_forward.1} parent=0 // pred_check_branch
    %24 = sbr.rel (0) target = $region21
  $region20: #{lstm_model_forward.1} parent=0 // pred_region
    _
  $region21: #{lstm_model_forward.1} parent=0 // pred_fallthru
    _
  // Predicated region
  $region22: #{lstm_model_forward.1} parent=0 // pred_check
    _
  $region23: #{lstm_model_forward.1} parent=0 // pred_check_branch
    %26 = sbr.rel (0) target = $region25
  $region24: #{lstm_model_forward.1} parent=0 // pred_region
    _
  $region25: #{lstm_model_forward.1} parent=0 // pred_fallthru
    _
  // Predicated region
  $region26: #{lstm_model_forward.1} parent=0 // pred_check
    _
  $region27: #{lstm_model_forward.1} parent=0 // pred_check_branch
    %28 = sbr.rel (0) target = $region29
  $region28: #{lstm_model_forward.1} parent=0 // pred_region
    _
  $region29: #{lstm_model_forward.1} parent=0 // pred_fallthru
    _
  // Predicated region
  $region30: #{lstm_model_forward.1} parent=0 // pred_check
    _
  $region31: #{lstm_model_forward.1} parent=0 // pred_check_branch
    %30 = sbr.rel (0) target = $region33
  $region32: #{lstm_model_forward.1} parent=0 // pred_region
    _
  $region33: #{lstm_model_forward.1} parent=0 // pred_fallthru
    _
  %v32 = vld [vmem:[%s0] sm:$0xf]
  %v33 = vld [vmem:[%s0 + $0x4] sm:$0xf]
  %v34 = vld [vmem:[%s0 + $0x8] sm:$0xf]
  %v35 = vld [vmem:[%s0 + $0xc] sm:$0xf]
  %v36 = vld [vmem:[%s0 + $0x10] sm:$0xf]
  %v37 = vld [vmem:[%s0 + $0x14] sm:$0xf]
  %v38 = vld [vmem:[%s0 + $0x18] sm:$0xf]
  %v39 = vld [vmem:[%s0 + $0x1c] sm:$0xf]
  %v40 = vld [vmem:[%s1] sm:$0x3]
  %v41 = vld [vmem:[%s3] sm:$0x1]
  %v43 = vlaneseq
  %v44 = vshrl.u32 %v43, 7
  %v45 = vsub.s32 0, %v44
  %v46 = vrot.slane %v41, %v45
  %v56 = vunpack.c.l.b16 %v32
  %v57 = vunpack.c.l.b16 %v33
  %v58 = vunpack.c.l.b16 %v34
  %v59 = vunpack.c.l.b16 %v35
  %v60 = vunpack.c.l.b16 %v36
  %v61 = vunpack.c.l.b16 %v37
  %v62 = vunpack.c.l.b16 %v38
  %v63 = vunpack.c.l.b16 %v39
  %v64 = vpack.c.b16 %v57, %v56
  %v65 = vpack.c.b16 %v59, %v58
  %v66 = vpack.c.b16 %v61, %v60
  %v67 = vpack.c.b16 %v63, %v62
  %vm68 = vcmask 31744
  %v70 = vsel %vm68, %v64, 0
  %v73 = vsel %vm68, %v65, 0
  %v76 = vsel %vm68, %v66, 0
  %v79 = vsel %vm68, %v67, 0
  %vm81 = vcmask 1041408
  %v83 = vsel %vm81, %v40, 0
  %85 = vmatprep.subr.bf16.mxu0 0
  %86 = vmatpush1.bf16.msra.mxu0 0
  %87 = vmatprep.subr.bf16.mxu0 0
  %88 = vmatpush1.bf16.msra.mxu0 0
  %89 = vmatprep.subr.bf16.mxu0 0
  %90 = vmatpush1.bf16.msra.mxu0 0
  %91 = vmatprep.subr.bf16.mxu0 0
  %92 = vmatpush1.bf16.msra.mxu0 0
  %93 = vmatprep.subr.bf16.mxu0 0
  %94 = vmatpush1.bf16.msra.mxu0 0
  %95 = vmatprep.subr.bf16.mxu0 0
  %96 = vmatpush1.bf16.msra.mxu0 0
  %97 = vmatprep.subr.bf16.mxu0 0
  %98 = vmatpush1.bf16.msra.mxu0 0
  %99 = vmatprep.subr.bf16.mxu0 0
  %100 = vmatpush1.bf16.msra.mxu0 %v83
  %101 = vmatprep.subr.bf16.mxu0 0
  %102 = vmatpush2.bf16.msra.mxu0 0
  %103 = vmatprep.subr.bf16.mxu0 0
  %104 = vmatpush2.bf16.msra.mxu0 0
  %105 = vmatprep.subr.bf16.mxu0 0
  %106 = vmatpush2.bf16.msra.mxu0 0
  %107 = vmatprep.subr.bf16.mxu0 0
  %108 = vmatpush2.bf16.msra.mxu0 0
  %109 = vmatprep.subr.bf16.mxu0 0
  %110 = vmatpush2.bf16.msra.mxu0 0
  %111 = vmatprep.subr.bf16.mxu0 0
  %112 = vmatpush2.bf16.msra.mxu0 0
  %113 = vmatprep.subr.bf16.mxu0 0
  %114 = vmatpush2.bf16.msra.mxu0 0
  %115 = vmatprep.subr.bf16.mxu0 0
  %116 = vmatpush2.bf16.msra.mxu0 0
  %117 = vmatprep.mubr.bf16.mxu0 0
  %118 = vmatmul.mubr.bf16.gmra.mxu0 %v70
  %v119 = vpop.f32.mrf.mxu0
  %v120 = vadd.f32 %v46, %v119
  %v121 = vpop.f32.mrf.mxu0
  %v122 = vpop.f32.mrf.mxu0
  %v123 = vadd.f32 %v46, %v122
  %v124 = vpop.f32.mrf.mxu0
  %125 = vmatprep.mubr.bf16.mxu0 0
  %126 = vmatmul.mubr.bf16.gmra.mxu0 %v73
  %v127 = vpop.f32.mrf.mxu0
  %v128 = vadd.f32 %v46, %v127
  %v129 = vpop.f32.mrf.mxu0
  %v130 = vpop.f32.mrf.mxu0
  %v131 = vadd.f32 %v46, %v130
  %v132 = vpop.f32.mrf.mxu0
  %133 = vmatprep.mubr.bf16.mxu0 0
  %134 = vmatmul.mubr.bf16.gmra.mxu0 %v76
  %v135 = vpop.f32.mrf.mxu0
  %v136 = vadd.f32 %v46, %v135
  %v137 = vpop.f32.mrf.mxu0
  %v138 = vpop.f32.mrf.mxu0
  %v139 = vadd.f32 %v46, %v138
  %v140 = vpop.f32.mrf.mxu0
  %141 = vmatprep.mubr.bf16.mxu0 0
  %142 = vmatmul.mubr.bf16.gmra.mxu0 %v79
  %v143 = vpop.f32.mrf.mxu0
  %v144 = vadd.f32 %v46, %v143
  %v145 = vpop.f32.mrf.mxu0
  %v146 = vpop.f32.mrf.mxu0
  %v147 = vadd.f32 %v46, %v146
  %v148 = vpop.f32.mrf.mxu0
  %149 = vdwg.mxu0
  %150 = vst [vmem:[#allocation2] sm:$0xff] %v120
  %151 = vst [vmem:[#allocation2 + $0x8] sm:$0xff] %v123
  %152 = vst [vmem:[#allocation2 + $0x10] sm:$0xff] %v128
  %153 = vst [vmem:[#allocation2 + $0x18] sm:$0xff] %v131
  %154 = vst [vmem:[#allocation2 + $0x20] sm:$0xff] %v136
  %155 = vst [vmem:[#allocation2 + $0x28] sm:$0xff] %v139
  %156 = vst [vmem:[#allocation2 + $0x30] sm:$0xff] %v144
  %157 = vst [vmem:[#allocation2 + $0x38] sm:$0xff] %v147
  %v158 = vld [vmem:[%s2] sm:$0xf]
  %v159 = vld [vmem:[%s2 + $0x4] sm:$0xf]
  %v160 = vld [vmem:[%s2 + $0x8] sm:$0xf]
  %v161 = vld [vmem:[%s2 + $0xc] sm:$0xf]
  %v162 = vld [vmem:[%s4] sm:$0xf]
  %v163 = vld [vmem:[%s4 + $0x4] sm:$0xf]
  %v164 = vld [vmem:[%s4 + $0x8] sm:$0xf]
  %v165 = vld [vmem:[%s4 + $0xc] sm:$0xf]
  %v166 = vld [vmem:[%s4 + $0x10] sm:$0xf]
  %v167 = vld [vmem:[%s4 + $0x14] sm:$0xf]
  %v168 = vld [vmem:[%s4 + $0x18] sm:$0xf]
  %v169 = vld [vmem:[%s4 + $0x1c] sm:$0xf]
  %v170 = vld [vmem:[%s5] sm:$0x1]
  %v171 = vld [vmem:[#allocation2] sm:$0xff]
  %v176 = vunpack.c.l.b16 %v158
  %v177 = vunpack.c.l.b16 %v159
  %v178 = vunpack.c.l.b16 %v160
  %v179 = vunpack.c.l.b16 %v161
  %v180 = vpack.c.b16 %v177, %v176
  %v181 = vpack.c.b16 %v179, %v178
  %vm184 = vcmask 261120
  %v186 = vsel %vm184, 0, 0
  %188 = vmatprep.subr.bf16.mxu0 0
  %189 = vmatpush1.bf16.msra.mxu0 0
  %190 = vmatprep.subr.bf16.mxu0 0
  %191 = vmatpush1.bf16.msra.mxu0 0
  %192 = vmatprep.subr.bf16.mxu0 0
  %193 = vmatpush1.bf16.msra.mxu0 0
  %194 = vmatprep.subr.bf16.mxu0 0
  %195 = vmatpush1.bf16.msra.mxu0 0
  %196 = vmatprep.subr.bf16.mxu0 0
  %197 = vmatpush1.bf16.msra.mxu0 0
  %198 = vmatprep.subr.bf16.mxu0 0
  %199 = vmatpush1.bf16.msra.mxu0 0
  %200 = vmatprep.subr.bf16.mxu0 0
  %201 = vmatpush1.bf16.msra.mxu0 %v181
  %202 = vmatprep.subr.bf16.mxu0 0
  %203 = vmatpush1.bf16.msra.mxu0 %v180
  %204 = vmatprep.subr.bf16.mxu0 0
  %205 = vmatpush2.bf16.msra.mxu0 0
  %206 = vmatprep.subr.bf16.mxu0 0
  %207 = vmatpush2.bf16.msra.mxu0 0
  %208 = vmatprep.subr.bf16.mxu0 0
  %209 = vmatpush2.bf16.msra.mxu0 0
  %210 = vmatprep.subr.bf16.mxu0 0
  %211 = vmatpush2.bf16.msra.mxu0 0
  %212 = vmatprep.subr.bf16.mxu0 0
  %213 = vmatpush2.bf16.msra.mxu0 0
  %214 = vmatprep.subr.bf16.mxu0 0
  %215 = vmatpush2.bf16.msra.mxu0 0
  %216 = vmatprep.subr.bf16.mxu0 0
  %217 = vmatpush2.bf16.msra.mxu0 0
  %218 = vmatprep.subr.bf16.mxu0 0
  %219 = vmatpush2.bf16.msra.mxu0 0
  %220 = vmatprep.mubr.bf16.mxu0 0
  %221 = vmatmul.mubr.bf16.gmra.mxu0 %v186
  %v222 = vpop.f32.mrf.mxu0
  %v223 = vadd.f32 0.0, %v222
  %v224 = vpop.f32.mrf.mxu0
  %v225 = vpop.f32.mrf.mxu0
  %v226 = vpop.f32.mrf.mxu0
  %227 = vdwg.mxu0
  %v228 = vadd.f32 %v171, %v223
  %v229 = vxor.u32 %v228, 2147483648
  %v230 = vmul.f32 %v229, 1.442695
  %v231 = vpow.pop %v230
  %v232 = vadd.f32 %v231, 1.0
  %v233 = vrcp.pop %v232
  %v234 = vmul.f32 1.0, %v233
  %v235 = vtanh.pop %v228
  %v236 = vmul.f32 %v234, 0.0
  %238 = vrot.lane.b32.xlu0 %v235, 32
  %v239 = vpop.permute.xlu0 %238
  %v241 = vmul.f32 %v234, %v239
  %243 = vrot.lane.b32.xlu0 %v241, 32
  %v244 = vpop.permute.xlu0 %243
  %v246 = vadd.f32 %v236, %v244
  %v247 = vtanh.pop %v246
  %249 = vrot.lane.b32.xlu0 %v247, 32
  %v250 = vpop.permute.xlu0 %249
  %v252 = vmul.f32 %v234, %v250
  %254 = vrot.lane.b32.xlu0 %v252, 64
  %v255 = vpop.permute.xlu0 %254
  %v257 = vsel %vm184, %v255, 0.0
  %v258 = vpack.c.bf16 %v257, %v257
  %v260 = vlaneseq
  %v261 = vshrl.u32 %v260, 7
  %v262 = vsub.s32 0, %v261
  %v263 = vrot.slane %v170, %v262
  %v273 = vunpack.c.l.b16 %v162
  %v274 = vunpack.c.l.b16 %v163
  %v275 = vunpack.c.l.b16 %v164
  %v276 = vunpack.c.l.b16 %v165
  %v277 = vunpack.c.l.b16 %v166
  %v278 = vunpack.c.l.b16 %v167
  %v279 = vunpack.c.l.b16 %v168
  %v280 = vunpack.c.l.b16 %v169
  %v281 = vpack.c.b16 %v274, %v273
  %v282 = vpack.c.b16 %v276, %v275
  %v283 = vpack.c.b16 %v278, %v277
  %v284 = vpack.c.b16 %v280, %v279
  %vm289 = vcmask 523264
  %v291 = vsel %vm289, %v258, 0
  %293 = vmatprep.subr.bf16.mxu0 0
  %294 = vmatpush1.bf16.msra.mxu0 0
  %295 = vmatprep.subr.bf16.mxu0 0
  %296 = vmatpush1.bf16.msra.mxu0 0
  %297 = vmatprep.subr.bf16.mxu0 0
  %298 = vmatpush1.bf16.msra.mxu0 0
  %299 = vmatprep.subr.bf16.mxu0 0
  %300 = vmatpush1.bf16.msra.mxu0 0
  %301 = vmatprep.subr.bf16.mxu0 0
  %302 = vmatpush1.bf16.msra.mxu0 %v284
  %303 = vmatprep.subr.bf16.mxu0 0
  %304 = vmatpush1.bf16.msra.mxu0 %v283
  %305 = vmatprep.subr.bf16.mxu0 0
  %306 = vmatpush1.bf16.msra.mxu0 %v282
  %307 = vmatprep.subr.bf16.mxu0 0
  %308 = vmatpush1.bf16.msra.mxu0 %v281
  %309 = vmatprep.subr.bf16.mxu0 0
  %310 = vmatpush2.bf16.msra.mxu0 0
  %311 = vmatprep.subr.bf16.mxu0 0
  %312 = vmatpush2.bf16.msra.mxu0 0
  %313 = vmatprep.subr.bf16.mxu0 0
  %314 = vmatpush2.bf16.msra.mxu0 0
  %315 = vmatprep.subr.bf16.mxu0 0
  %316 = vmatpush2.bf16.msra.mxu0 0
  %317 = vmatprep.subr.bf16.mxu0 0
  %318 = vmatpush2.bf16.msra.mxu0 0
  %319 = vmatprep.subr.bf16.mxu0 0
  %320 = vmatpush2.bf16.msra.mxu0 0
  %321 = vmatprep.subr.bf16.mxu0 0
  %322 = vmatpush2.bf16.msra.mxu0 0
  %323 = vmatprep.subr.bf16.mxu0 0
  %324 = vmatpush2.bf16.msra.mxu0 0
  %325 = vmatprep.mubr.bf16.mxu0 0
  %326 = vmatmul.mubr.bf16.gmra.mxu0 %v291
  %v327 = vpop.f32.mrf.mxu0
  %v328 = vadd.f32 %v263, %v327
  %v329 = vpop.f32.mrf.mxu0
  %v330 = vpop.f32.mrf.mxu0
  %v331 = vpop.f32.mrf.mxu0
  %332 = vdwg.mxu0
  %v333 = vxor.u32 %v328, 2147483648
  %v334 = vmul.f32 %v333, 1.442695
  %v335 = vpow.pop %v334
  %v336 = vadd.f32 %v335, 1.0
  %v337 = vrcp.pop %v336
  %v338 = vmul.f32 1.0, %v337
  %v339 = vtanh.pop %v328
  %v340 = vmul.f32 %v338, 0.0
  %342 = vrot.lane.b32.xlu0 %v339, 32
  %v343 = vpop.permute.xlu0 %342
  %v345 = vmul.f32 %v338, %v343
  %347 = vrot.lane.b32.xlu0 %v345, 32
  %v348 = vpop.permute.xlu0 %347
  %v350 = vadd.f32 %v340, %v348
  %v351 = vtanh.pop %v350
  %353 = vrot.lane.b32.xlu0 %v351, 32
  %v354 = vpop.permute.xlu0 %353
  %v356 = vmul.f32 %v338, %v354
  %v357 = vld [vmem:[#allocation2 + $0x8] sm:$0xff]
  %v358 = vpack.c.bf16 %v252, %v252
  %360 = vrot.lane.b32.xlu0 %v358, 64
  %v361 = vpop.permute.xlu0 %360
  %v363 = vsel %vm184, %v361, 0
  %365 = vmatprep.subr.bf16.mxu0 0
  %366 = vmatpush1.bf16.msra.mxu0 0
  %367 = vmatprep.subr.bf16.mxu0 0
  %368 = vmatpush1.bf16.msra.mxu0 0
  %369 = vmatprep.subr.bf16.mxu0 0
  %370 = vmatpush1.bf16.msra.mxu0 0
  %371 = vmatprep.subr.bf16.mxu0 0
  %372 = vmatpush1.bf16.msra.mxu0 0
  %373 = vmatprep.subr.bf16.mxu0 0
  %374 = vmatpush1.bf16.msra.mxu0 0
  %375 = vmatprep.subr.bf16.mxu0 0
  %376 = vmatpush1.bf16.msra.mxu0 0
  %377 = vmatprep.subr.bf16.mxu0 0
  %378 = vmatpush1.bf16.msra.mxu0 %v181
  %379 = vmatprep.subr.bf16.mxu0 0
  %380 = vmatpush1.bf16.msra.mxu0 %v180
  %381 = vmatprep.subr.bf16.mxu0 0
  %382 = vmatpush2.bf16.msra.mxu0 0
  %383 = vmatprep.subr.bf16.mxu0 0
  %384 = vmatpush2.bf16.msra.mxu0 0
  %385 = vmatprep.subr.bf16.mxu0 0
  %386 = vmatpush2.bf16.msra.mxu0 0
  %387 = vmatprep.subr.bf16.mxu0 0
  %388 = vmatpush2.bf16.msra.mxu0 0
  %389 = vmatprep.subr.bf16.mxu0 0
  %390 = vmatpush2.bf16.msra.mxu0 0
  %391 = vmatprep.subr.bf16.mxu0 0
  %392 = vmatpush2.bf16.msra.mxu0 0
  %393 = vmatprep.subr.bf16.mxu0 0
  %394 = vmatpush2.bf16.msra.mxu0 0
  %395 = vmatprep.subr.bf16.mxu0 0
  %396 = vmatpush2.bf16.msra.mxu0 0
  %397 = vmatprep.mubr.bf16.mxu0 0
  %398 = vmatmul.mubr.bf16.gmra.mxu0 %v363
  %v399 = vpop.f32.mrf.mxu0
  %v400 = vadd.f32 0.0, %v399
  %v401 = vpop.f32.mrf.mxu0
  %v402 = vpop.f32.mrf.mxu0
  %v403 = vpop.f32.mrf.mxu0
  %404 = vdwg.mxu0
  %v405 = vadd.f32 %v357, %v400
  %v406 = vxor.u32 %v405, 2147483648
  %v407 = vmul.f32 %v406, 1.442695
  %v408 = vpow.pop %v407
  %v409 = vadd.f32 %v408, 1.0
  %v410 = vrcp.pop %v409
  %v411 = vmul.f32 1.0, %v410
  %v412 = vtanh.pop %v405
  %v413 = vmul.f32 %v411, %v246
  %415 = vrot.lane.b32.xlu0 %v412, 32
  %v416 = vpop.permute.xlu0 %415
  %v418 = vmul.f32 %v411, %v416
  %420 = vrot.lane.b32.xlu0 %v418, 32
  %v421 = vpop.permute.xlu0 %420
  %v423 = vadd.f32 %v413, %v421
  %v424 = vtanh.pop %v423
  %426 = vrot.lane.b32.xlu0 %v424, 32
  %v427 = vpop.permute.xlu0 %426
  %v429 = vmul.f32 %v411, %v427
  %431 = vrot.lane.b32.xlu0 %v429, 64
  %v432 = vpop.permute.xlu0 %431
  %435 = vrot.lane.b32.xlu0 %v356, 96
  %v436 = vpop.permute.xlu0 %435
  %v438 = vsel %vm184, %v432, %v436
  %v439 = vpack.c.bf16 %v438, %v438
  %v441 = vsel %vm289, %v439, 0
  %443 = vmatprep.subr.bf16.mxu0 0
  %444 = vmatpush1.bf16.msra.mxu0 0
  %445 = vmatprep.subr.bf16.mxu0 0
  %446 = vmatpush1.bf16.msra.mxu0 0
  %447 = vmatprep.subr.bf16.mxu0 0
  %448 = vmatpush1.bf16.msra.mxu0 0
  %449 = vmatprep.subr.bf16.mxu0 0
  %450 = vmatpush1.bf16.msra.mxu0 0
  %451 = vmatprep.subr.bf16.mxu0 0
  %452 = vmatpush1.bf16.msra.mxu0 %v284
  %453 = vmatprep.subr.bf16.mxu0 0
  %454 = vmatpush1.bf16.msra.mxu0 %v283
  %455 = vmatprep.subr.bf16.mxu0 0
  %456 = vmatpush1.bf16.msra.mxu0 %v282
  %457 = vmatprep.subr.bf16.mxu0 0
  %458 = vmatpush1.bf16.msra.mxu0 %v281
  %459 = vmatprep.subr.bf16.mxu0 0
  %460 = vmatpush2.bf16.msra.mxu0 0
  %461 = vmatprep.subr.bf16.mxu0 0
  %462 = vmatpush2.bf16.msra.mxu0 0
  %463 = vmatprep.subr.bf16.mxu0 0
  %464 = vmatpush2.bf16.msra.mxu0 0
  %465 = vmatprep.subr.bf16.mxu0 0
  %466 = vmatpush2.bf16.msra.mxu0 0
  %467 = vmatprep.subr.bf16.mxu0 0
  %468 = vmatpush2.bf16.msra.mxu0 0
  %469 = vmatprep.subr.bf16.mxu0 0
  %470 = vmatpush2.bf16.msra.mxu0 0
  %471 = vmatprep.subr.bf16.mxu0 0
  %472 = vmatpush2.bf16.msra.mxu0 0
  %473 = vmatprep.subr.bf16.mxu0 0
  %474 = vmatpush2.bf16.msra.mxu0 0
  %475 = vmatprep.mubr.bf16.mxu0 0
  %476 = vmatmul.mubr.bf16.gmra.mxu0 %v441
  %v477 = vpop.f32.mrf.mxu0
  %v478 = vadd.f32 %v263, %v477
  %v479 = vpop.f32.mrf.mxu0
  %v480 = vpop.f32.mrf.mxu0
  %v481 = vpop.f32.mrf.mxu0
  %482 = vdwg.mxu0
  %v483 = vxor.u32 %v478, 2147483648
  %v484 = vmul.f32 %v483, 1.442695
  %v485 = vpow.pop %v484
  %v486 = vadd.f32 %v485, 1.0
  %v487 = vrcp.pop %v486
  %v488 = vmul.f32 1.0, %v487
  %v489 = vtanh.pop %v478
  %v490 = vmul.f32 %v488, %v350
  %492 = vrot.lane.b32.xlu0 %v489, 32
  %v493 = vpop.permute.xlu0 %492
  %v495 = vmul.f32 %v488, %v493
  %497 = vrot.lane.b32.xlu0 %v495, 32
  %v498 = vpop.permute.xlu0 %497
  %v500 = vadd.f32 %v490, %v498
  %v501 = vtanh.pop %v500
  %503 = vrot.lane.b32.xlu0 %v501, 32
  %v504 = vpop.permute.xlu0 %503
  %v506 = vmul.f32 %v488, %v504
  %v507 = vld [vmem:[#allocation2 + $0x10] sm:$0xff]
  %v508 = vpack.c.bf16 %v429, %v429
  %510 = vrot.lane.b32.xlu0 %v508, 64
  %v511 = vpop.permute.xlu0 %510
  %v513 = vsel %vm184, %v511, 0
  %515 = vmatprep.subr.bf16.mxu0 0
  %516 = vmatpush1.bf16.msra.mxu0 0
  %517 = vmatprep.subr.bf16.mxu0 0
  %518 = vmatpush1.bf16.msra.mxu0 0
  %519 = vmatprep.subr.bf16.mxu0 0
  %520 = vmatpush1.bf16.msra.mxu0 0
  %521 = vmatprep.subr.bf16.mxu0 0
  %522 = vmatpush1.bf16.msra.mxu0 0
  %523 = vmatprep.subr.bf16.mxu0 0
  %524 = vmatpush1.bf16.msra.mxu0 0
  %525 = vmatprep.subr.bf16.mxu0 0
  %526 = vmatpush1.bf16.msra.mxu0 0
  %527 = vmatprep.subr.bf16.mxu0 0
  %528 = vmatpush1.bf16.msra.mxu0 %v181
  %529 = vmatprep.subr.bf16.mxu0 0
  %530 = vmatpush1.bf16.msra.mxu0 %v180
  %531 = vmatprep.subr.bf16.mxu0 0
  %532 = vmatpush2.bf16.msra.mxu0 0
  %533 = vmatprep.subr.bf16.mxu0 0
  %534 = vmatpush2.bf16.msra.mxu0 0
  %535 = vmatprep.subr.bf16.mxu0 0
  %536 = vmatpush2.bf16.msra.mxu0 0
  %537 = vmatprep.subr.bf16.mxu0 0
  %538 = vmatpush2.bf16.msra.mxu0 0
  %539 = vmatprep.subr.bf16.mxu0 0
  %540 = vmatpush2.bf16.msra.mxu0 0
  %541 = vmatprep.subr.bf16.mxu0 0
  %542 = vmatpush2.bf16.msra.mxu0 0
  %543 = vmatprep.subr.bf16.mxu0 0
  %544 = vmatpush2.bf16.msra.mxu0 0
  %545 = vmatprep.subr.bf16.mxu0 0
  %546 = vmatpush2.bf16.msra.mxu0 0
  %547 = vmatprep.mubr.bf16.mxu0 0
  %548 = vmatmul.mubr.bf16.gmra.mxu0 %v513
  %v549 = vpop.f32.mrf.mxu0
  %v550 = vadd.f32 0.0, %v549
  %v551 = vpop.f32.mrf.mxu0
  %v552 = vpop.f32.mrf.mxu0
  %v553 = vpop.f32.mrf.mxu0
  %554 = vdwg.mxu0
  %v555 = vadd.f32 %v507, %v550
  %v556 = vxor.u32 %v555, 2147483648
  %v557 = vmul.f32 %v556, 1.442695
  %v558 = vpow.pop %v557
  %v559 = vadd.f32 %v558, 1.0
  %v560 = vrcp.pop %v559
  %v561 = vmul.f32 1.0, %v560
  %v562 = vtanh.pop %v555
  %v563 = vmul.f32 %v561, %v423
  %565 = vrot.lane.b32.xlu0 %v562, 32
  %v566 = vpop.permute.xlu0 %565
  %v568 = vmul.f32 %v561, %v566
  %570 = vrot.lane.b32.xlu0 %v568, 32
  %v571 = vpop.permute.xlu0 %570
  %v573 = vadd.f32 %v563, %v571
  %v574 = vtanh.pop %v573
  %576 = vrot.lane.b32.xlu0 %v574, 32
  %v577 = vpop.permute.xlu0 %576
  %v579 = vmul.f32 %v561, %v577
  %581 = vrot.lane.b32.xlu0 %v579, 64
  %v582 = vpop.permute.xlu0 %581
  %585 = vrot.lane.b32.xlu0 %v506, 96
  %v586 = vpop.permute.xlu0 %585
  %v588 = vsel %vm184, %v582, %v586
  %v589 = vpack.c.bf16 %v588, %v588
  %v591 = vsel %vm289, %v589, 0
  %593 = vmatprep.subr.bf16.mxu0 0
  %594 = vmatpush1.bf16.msra.mxu0 0
  %595 = vmatprep.subr.bf16.mxu0 0
  %596 = vmatpush1.bf16.msra.mxu0 0
  %597 = vmatprep.subr.bf16.mxu0 0
  %598 = vmatpush1.bf16.msra.mxu0 0
  %599 = vmatprep.subr.bf16.mxu0 0
  %600 = vmatpush1.bf16.msra.mxu0 0
  %601 = vmatprep.subr.bf16.mxu0 0
  %602 = vmatpush1.bf16.msra.mxu0 %v284
  %603 = vmatprep.subr.bf16.mxu0 0
  %604 = vmatpush1.bf16.msra.mxu0 %v283
  %605 = vmatprep.subr.bf16.mxu0 0
  %606 = vmatpush1.bf16.msra.mxu0 %v282
  %607 = vmatprep.subr.bf16.mxu0 0
  %608 = vmatpush1.bf16.msra.mxu0 %v281
  %609 = vmatprep.subr.bf16.mxu0 0
  %610 = vmatpush2.bf16.msra.mxu0 0
  %611 = vmatprep.subr.bf16.mxu0 0
  %612 = vmatpush2.bf16.msra.mxu0 0
  %613 = vmatprep.subr.bf16.mxu0 0
  %614 = vmatpush2.bf16.msra.mxu0 0
  %615 = vmatprep.subr.bf16.mxu0 0
  %616 = vmatpush2.bf16.msra.mxu0 0
  %617 = vmatprep.subr.bf16.mxu0 0
  %618 = vmatpush2.bf16.msra.mxu0 0
  %619 = vmatprep.subr.bf16.mxu0 0
  %620 = vmatpush2.bf16.msra.mxu0 0
  %621 = vmatprep.subr.bf16.mxu0 0
  %622 = vmatpush2.bf16.msra.mxu0 0
  %623 = vmatprep.subr.bf16.mxu0 0
  %624 = vmatpush2.bf16.msra.mxu0 0
  %625 = vmatprep.mubr.bf16.mxu0 0
  %626 = vmatmul.mubr.bf16.gmra.mxu0 %v591
  %v627 = vpop.f32.mrf.mxu0
  %v628 = vadd.f32 %v263, %v627
  %v629 = vpop.f32.mrf.mxu0
  %v630 = vpop.f32.mrf.mxu0
  %v631 = vpop.f32.mrf.mxu0
  %632 = vdwg.mxu0
  %v633 = vxor.u32 %v628, 2147483648
  %v634 = vmul.f32 %v633, 1.442695
  %v635 = vpow.pop %v634
  %v636 = vadd.f32 %v635, 1.0
  %v637 = vrcp.pop %v636
  %v638 = vmul.f32 1.0, %v637
  %v639 = vtanh.pop %v628
  %v640 = vmul.f32 %v638, %v500
  %642 = vrot.lane.b32.xlu0 %v639, 32
  %v643 = vpop.permute.xlu0 %642
  %v645 = vmul.f32 %v638, %v643
  %647 = vrot.lane.b32.xlu0 %v645, 32
  %v648 = vpop.permute.xlu0 %647
  %v650 = vadd.f32 %v640, %v648
  %v651 = vtanh.pop %v650
  %653 = vrot.lane.b32.xlu0 %v651, 32
  %v654 = vpop.permute.xlu0 %653
  %v656 = vmul.f32 %v638, %v654
  %v657 = vld [vmem:[#allocation2 + $0x18] sm:$0xff]
  %v658 = vpack.c.bf16 %v579, %v579
  %660 = vrot.lane.b32.xlu0 %v658, 64
  %v661 = vpop.permute.xlu0 %660
  %v663 = vsel %vm184, %v661, 0
  %665 = vmatprep.subr.bf16.mxu0 0
  %666 = vmatpush1.bf16.msra.mxu0 0
  %667 = vmatprep.subr.bf16.mxu0 0
  %668 = vmatpush1.bf16.msra.mxu0 0
  %669 = vmatprep.subr.bf16.mxu0 0
  %670 = vmatpush1.bf16.msra.mxu0 0
  %671 = vmatprep.subr.bf16.mxu0 0
  %672 = vmatpush1.bf16.msra.mxu0 0
  %673 = vmatprep.subr.bf16.mxu0 0
  %674 = vmatpush1.bf16.msra.mxu0 0
  %675 = vmatprep.subr.bf16.mxu0 0
  %676 = vmatpush1.bf16.msra.mxu0 0
  %677 = vmatprep.subr.bf16.mxu0 0
  %678 = vmatpush1.bf16.msra.mxu0 %v181
  %679 = vmatprep.subr.bf16.mxu0 0
  %680 = vmatpush1.bf16.msra.mxu0 %v180
  %681 = vmatprep.subr.bf16.mxu0 0
  %682 = vmatpush2.bf16.msra.mxu0 0
  %683 = vmatprep.subr.bf16.mxu0 0
  %684 = vmatpush2.bf16.msra.mxu0 0
  %685 = vmatprep.subr.bf16.mxu0 0
  %686 = vmatpush2.bf16.msra.mxu0 0
  %687 = vmatprep.subr.bf16.mxu0 0
  %688 = vmatpush2.bf16.msra.mxu0 0
  %689 = vmatprep.subr.bf16.mxu0 0
  %690 = vmatpush2.bf16.msra.mxu0 0
  %691 = vmatprep.subr.bf16.mxu0 0
  %692 = vmatpush2.bf16.msra.mxu0 0
  %693 = vmatprep.subr.bf16.mxu0 0
  %694 = vmatpush2.bf16.msra.mxu0 0
  %695 = vmatprep.subr.bf16.mxu0 0
  %696 = vmatpush2.bf16.msra.mxu0 0
  %697 = vmatprep.mubr.bf16.mxu0 0
  %698 = vmatmul.mubr.bf16.gmra.mxu0 %v663
  %v699 = vpop.f32.mrf.mxu0
  %v700 = vadd.f32 0.0, %v699
  %v701 = vpop.f32.mrf.mxu0
  %v702 = vpop.f32.mrf.mxu0
  %v703 = vpop.f32.mrf.mxu0
  %704 = vdwg.mxu0
  %v705 = vadd.f32 %v657, %v700
  %v706 = vxor.u32 %v705, 2147483648
  %v707 = vmul.f32 %v706, 1.442695
  %v708 = vpow.pop %v707
  %v709 = vadd.f32 %v708, 1.0
  %v710 = vrcp.pop %v709
  %v711 = vmul.f32 1.0, %v710
  %v712 = vtanh.pop %v705
  %v713 = vmul.f32 %v711, %v573
  %715 = vrot.lane.b32.xlu0 %v712, 32
  %v716 = vpop.permute.xlu0 %715
  %v718 = vmul.f32 %v711, %v716
  %720 = vrot.lane.b32.xlu0 %v718, 32
  %v721 = vpop.permute.xlu0 %720
  %v723 = vadd.f32 %v713, %v721
  %v724 = vtanh.pop %v723
  %726 = vrot.lane.b32.xlu0 %v724, 32
  %v727 = vpop.permute.xlu0 %726
  %v729 = vmul.f32 %v711, %v727
  %731 = vrot.lane.b32.xlu0 %v729, 64
  %v732 = vpop.permute.xlu0 %731
  %735 = vrot.lane.b32.xlu0 %v656, 96
  %v736 = vpop.permute.xlu0 %735
  %v738 = vsel %vm184, %v732, %v736
  %v739 = vpack.c.bf16 %v738, %v738
  %v741 = vsel %vm289, %v739, 0
  %743 = vmatprep.subr.bf16.mxu0 0
  %744 = vmatpush1.bf16.msra.mxu0 0
  %745 = vmatprep.subr.bf16.mxu0 0
  %746 = vmatpush1.bf16.msra.mxu0 0
  %747 = vmatprep.subr.bf16.mxu0 0
  %748 = vmatpush1.bf16.msra.mxu0 0
  %749 = vmatprep.subr.bf16.mxu0 0
  %750 = vmatpush1.bf16.msra.mxu0 0
  %751 = vmatprep.subr.bf16.mxu0 0
  %752 = vmatpush1.bf16.msra.mxu0 %v284
  %753 = vmatprep.subr.bf16.mxu0 0
  %754 = vmatpush1.bf16.msra.mxu0 %v283
  %755 = vmatprep.subr.bf16.mxu0 0
  %756 = vmatpush1.bf16.msra.mxu0 %v282
  %757 = vmatprep.subr.bf16.mxu0 0
  %758 = vmatpush1.bf16.msra.mxu0 %v281
  %759 = vmatprep.subr.bf16.mxu0 0
  %760 = vmatpush2.bf16.msra.mxu0 0
  %761 = vmatprep.subr.bf16.mxu0 0
  %762 = vmatpush2.bf16.msra.mxu0 0
  %763 = vmatprep.subr.bf16.mxu0 0
  %764 = vmatpush2.bf16.msra.mxu0 0
  %765 = vmatprep.subr.bf16.mxu0 0
  %766 = vmatpush2.bf16.msra.mxu0 0
  %767 = vmatprep.subr.bf16.mxu0 0
  %768 = vmatpush2.bf16.msra.mxu0 0
  %769 = vmatprep.subr.bf16.mxu0 0
  %770 = vmatpush2.bf16.msra.mxu0 0
  %771 = vmatprep.subr.bf16.mxu0 0
  %772 = vmatpush2.bf16.msra.mxu0 0
  %773 = vmatprep.subr.bf16.mxu0 0
  %774 = vmatpush2.bf16.msra.mxu0 0
  %775 = vmatprep.mubr.bf16.mxu0 0
  %776 = vmatmul.mubr.bf16.gmra.mxu0 %v741
  %v777 = vpop.f32.mrf.mxu0
  %v778 = vadd.f32 %v263, %v777
  %v779 = vpop.f32.mrf.mxu0
  %v780 = vpop.f32.mrf.mxu0
  %v781 = vpop.f32.mrf.mxu0
  %782 = vdwg.mxu0
  %v783 = vxor.u32 %v778, 2147483648
  %v784 = vmul.f32 %v783, 1.442695
  %v785 = vpow.pop %v784
  %v786 = vadd.f32 %v785, 1.0
  %v787 = vrcp.pop %v786
  %v788 = vmul.f32 1.0, %v787
  %v789 = vtanh.pop %v778
  %v790 = vmul.f32 %v788, %v650
  %792 = vrot.lane.b32.xlu0 %v789, 32
  %v793 = vpop.permute.xlu0 %792
  %v795 = vmul.f32 %v788, %v793
  %797 = vrot.lane.b32.xlu0 %v795, 32
  %v798 = vpop.permute.xlu0 %797
  %v800 = vadd.f32 %v790, %v798
  %v801 = vtanh.pop %v800
  %803 = vrot.lane.b32.xlu0 %v801, 32
  %v804 = vpop.permute.xlu0 %803
  %v806 = vmul.f32 %v788, %v804
  %v807 = vld [vmem:[#allocation2 + $0x20] sm:$0xff]
  %v808 = vpack.c.bf16 %v729, %v729
  %810 = vrot.lane.b32.xlu0 %v808, 64
  %v811 = vpop.permute.xlu0 %810
  %v813 = vsel %vm184, %v811, 0
  %815 = vmatprep.subr.bf16.mxu0 0
  %816 = vmatpush1.bf16.msra.mxu0 0
  %817 = vmatprep.subr.bf16.mxu0 0
  %818 = vmatpush1.bf16.msra.mxu0 0
  %819 = vmatprep.subr.bf16.mxu0 0
  %820 = vmatpush1.bf16.msra.mxu0 0
  %821 = vmatprep.subr.bf16.mxu0 0
  %822 = vmatpush1.bf16.msra.mxu0 0
  %823 = vmatprep.subr.bf16.mxu0 0
  %824 = vmatpush1.bf16.msra.mxu0 0
  %825 = vmatprep.subr.bf16.mxu0 0
  %826 = vmatpush1.bf16.msra.mxu0 0
  %827 = vmatprep.subr.bf16.mxu0 0
  %828 = vmatpush1.bf16.msra.mxu0 %v181
  %829 = vmatprep.subr.bf16.mxu0 0
  %830 = vmatpush1.bf16.msra.mxu0 %v180
  %831 = vmatprep.subr.bf16.mxu0 0
  %832 = vmatpush2.bf16.msra.mxu0 0
  %833 = vmatprep.subr.bf16.mxu0 0
  %834 = vmatpush2.bf16.msra.mxu0 0
  %835 = vmatprep.subr.bf16.mxu0 0
  %836 = vmatpush2.bf16.msra.mxu0 0
  %837 = vmatprep.subr.bf16.mxu0 0
  %838 = vmatpush2.bf16.msra.mxu0 0
  %839 = vmatprep.subr.bf16.mxu0 0
  %840 = vmatpush2.bf16.msra.mxu0 0
  %841 = vmatprep.subr.bf16.mxu0 0
  %842 = vmatpush2.bf16.msra.mxu0 0
  %843 = vmatprep.subr.bf16.mxu0 0
  %844 = vmatpush2.bf16.msra.mxu0 0
  %845 = vmatprep.subr.bf16.mxu0 0
  %846 = vmatpush2.bf16.msra.mxu0 0
  %847 = vmatprep.mubr.bf16.mxu0 0
  %848 = vmatmul.mubr.bf16.gmra.mxu0 %v813
  %v849 = vpop.f32.mrf.mxu0
  %v850 = vadd.f32 0.0, %v849
  %v851 = vpop.f32.mrf.mxu0
  %v852 = vpop.f32.mrf.mxu0
  %v853 = vpop.f32.mrf.mxu0
  %854 = vdwg.mxu0
  %v855 = vadd.f32 %v807, %v850
  %v856 = vxor.u32 %v855, 2147483648
  %v857 = vmul.f32 %v856, 1.442695
  %v858 = vpow.pop %v857
  %v859 = vadd.f32 %v858, 1.0
  %v860 = vrcp.pop %v859
  %v861 = vmul.f32 1.0, %v860
  %v862 = vtanh.pop %v855
  %v863 = vmul.f32 %v861, %v723
  %865 = vrot.lane.b32.xlu0 %v862, 32
  %v866 = vpop.permute.xlu0 %865
  %v868 = vmul.f32 %v861, %v866
  %870 = vrot.lane.b32.xlu0 %v868, 32
  %v871 = vpop.permute.xlu0 %870
  %v873 = vadd.f32 %v863, %v871
  %v874 = vtanh.pop %v873
  %876 = vrot.lane.b32.xlu0 %v874, 32
  %v877 = vpop.permute.xlu0 %876
  %v879 = vmul.f32 %v861, %v877
  %881 = vrot.lane.b32.xlu0 %v879, 64
  %v882 = vpop.permute.xlu0 %881
  %885 = vrot.lane.b32.xlu0 %v806, 96
  %v886 = vpop.permute.xlu0 %885
  %v888 = vsel %vm184, %v882, %v886
  %v889 = vpack.c.bf16 %v888, %v888
  %v891 = vsel %vm289, %v889, 0
  %893 = vmatprep.subr.bf16.mxu0 0
  %894 = vmatpush1.bf16.msra.mxu0 0
  %895 = vmatprep.subr.bf16.mxu0 0
  %896 = vmatpush1.bf16.msra.mxu0 0
  %897 = vmatprep.subr.bf16.mxu0 0
  %898 = vmatpush1.bf16.msra.mxu0 0
  %899 = vmatprep.subr.bf16.mxu0 0
  %900 = vmatpush1.bf16.msra.mxu0 0
  %901 = vmatprep.subr.bf16.mxu0 0
  %902 = vmatpush1.bf16.msra.mxu0 %v284
  %903 = vmatprep.subr.bf16.mxu0 0
  %904 = vmatpush1.bf16.msra.mxu0 %v283
  %905 = vmatprep.subr.bf16.mxu0 0
  %906 = vmatpush1.bf16.msra.mxu0 %v282
  %907 = vmatprep.subr.bf16.mxu0 0
  %908 = vmatpush1.bf16.msra.mxu0 %v281
  %909 = vmatprep.subr.bf16.mxu0 0
  %910 = vmatpush2.bf16.msra.mxu0 0
  %911 = vmatprep.subr.bf16.mxu0 0
  %912 = vmatpush2.bf16.msra.mxu0 0
  %913 = vmatprep.subr.bf16.mxu0 0
  %914 = vmatpush2.bf16.msra.mxu0 0
  %915 = vmatprep.subr.bf16.mxu0 0
  %916 = vmatpush2.bf16.msra.mxu0 0
  %917 = vmatprep.subr.bf16.mxu0 0
  %918 = vmatpush2.bf16.msra.mxu0 0
  %919 = vmatprep.subr.bf16.mxu0 0
  %920 = vmatpush2.bf16.msra.mxu0 0
  %921 = vmatprep.subr.bf16.mxu0 0
  %922 = vmatpush2.bf16.msra.mxu0 0
  %923 = vmatprep.subr.bf16.mxu0 0
  %924 = vmatpush2.bf16.msra.mxu0 0
  %925 = vmatprep.mubr.bf16.mxu0 0
  %926 = vmatmul.mubr.bf16.gmra.mxu0 %v891
  %v927 = vpop.f32.mrf.mxu0
  %v928 = vadd.f32 %v263, %v927
  %v929 = vpop.f32.mrf.mxu0
  %v930 = vpop.f32.mrf.mxu0
  %v931 = vpop.f32.mrf.mxu0
  %932 = vdwg.mxu0
  %v933 = vxor.u32 %v928, 2147483648
  %v934 = vmul.f32 %v933, 1.442695
  %v935 = vpow.pop %v934
  %v936 = vadd.f32 %v935, 1.0
  %v937 = vrcp.pop %v936
  %v938 = vmul.f32 1.0, %v937
  %v939 = vtanh.pop %v928
  %v940 = vmul.f32 %v938, %v800
  %942 = vrot.lane.b32.xlu0 %v939, 32
  %v943 = vpop.permute.xlu0 %942
  %v945 = vmul.f32 %v938, %v943
  %947 = vrot.lane.b32.xlu0 %v945, 32
  %v948 = vpop.permute.xlu0 %947
  %v950 = vadd.f32 %v940, %v948
  %v951 = vtanh.pop %v950
  %953 = vrot.lane.b32.xlu0 %v951, 32
  %v954 = vpop.permute.xlu0 %953
  %v956 = vmul.f32 %v938, %v954
  %v957 = vld [vmem:[#allocation2 + $0x28] sm:$0xff]
  %v958 = vpack.c.bf16 %v879, %v879
  %960 = vrot.lane.b32.xlu0 %v958, 64
  %v961 = vpop.permute.xlu0 %960
  %v963 = vsel %vm184, %v961, 0
  %965 = vmatprep.subr.bf16.mxu0 0
  %966 = vmatpush1.bf16.msra.mxu0 0
  %967 = vmatprep.subr.bf16.mxu0 0
  %968 = vmatpush1.bf16.msra.mxu0 0
  %969 = vmatprep.subr.bf16.mxu0 0
  %970 = vmatpush1.bf16.msra.mxu0 0
  %971 = vmatprep.subr.bf16.mxu0 0
  %972 = vmatpush1.bf16.msra.mxu0 0
  %973 = vmatprep.subr.bf16.mxu0 0
  %974 = vmatpush1.bf16.msra.mxu0 0
  %975 = vmatprep.subr.bf16.mxu0 0
  %976 = vmatpush1.bf16.msra.mxu0 0
  %977 = vmatprep.subr.bf16.mxu0 0
  %978 = vmatpush1.bf16.msra.mxu0 %v181
  %979 = vmatprep.subr.bf16.mxu0 0
  %980 = vmatpush1.bf16.msra.mxu0 %v180
  %981 = vmatprep.subr.bf16.mxu0 0
  %982 = vmatpush2.bf16.msra.mxu0 0
  %983 = vmatprep.subr.bf16.mxu0 0
  %984 = vmatpush2.bf16.msra.mxu0 0
  %985 = vmatprep.subr.bf16.mxu0 0
  %986 = vmatpush2.bf16.msra.mxu0 0
  %987 = vmatprep.subr.bf16.mxu0 0
  %988 = vmatpush2.bf16.msra.mxu0 0
  %989 = vmatprep.subr.bf16.mxu0 0
  %990 = vmatpush2.bf16.msra.mxu0 0
  %991 = vmatprep.subr.bf16.mxu0 0
  %992 = vmatpush2.bf16.msra.mxu0 0
  %993 = vmatprep.subr.bf16.mxu0 0
  %994 = vmatpush2.bf16.msra.mxu0 0
  %995 = vmatprep.subr.bf16.mxu0 0
  %996 = vmatpush2.bf16.msra.mxu0 0
  %997 = vmatprep.mubr.bf16.mxu0 0
  %998 = vmatmul.mubr.bf16.gmra.mxu0 %v963
  %v999 = vpop.f32.mrf.mxu0
  %v1000 = vadd.f32 0.0, %v999
  %v1001 = vpop.f32.mrf.mxu0
  %v1002 = vpop.f32.mrf.mxu0
  %v1003 = vpop.f32.mrf.mxu0
  %1004 = vdwg.mxu0
  %v1005 = vadd.f32 %v957, %v1000
  %v1006 = vxor.u32 %v1005, 2147483648
  %v1007 = vmul.f32 %v1006, 1.442695
  %v1008 = vpow.pop %v1007
  %v1009 = vadd.f32 %v1008, 1.0
  %v1010 = vrcp.pop %v1009
  %v1011 = vmul.f32 1.0, %v1010
  %v1012 = vtanh.pop %v1005
  %v1013 = vmul.f32 %v1011, %v873
  %1015 = vrot.lane.b32.xlu0 %v1012, 32
  %v1016 = vpop.permute.xlu0 %1015
  %v1018 = vmul.f32 %v1011, %v1016
  %1020 = vrot.lane.b32.xlu0 %v1018, 32
  %v1021 = vpop.permute.xlu0 %1020
  %v1023 = vadd.f32 %v1013, %v1021
  %v1024 = vtanh.pop %v1023
  %1026 = vrot.lane.b32.xlu0 %v1024, 32
  %v1027 = vpop.permute.xlu0 %1026
  %v1029 = vmul.f32 %v1011, %v1027
  %1031 = vrot.lane.b32.xlu0 %v1029, 64
  %v1032 = vpop.permute.xlu0 %1031
  %1035 = vrot.lane.b32.xlu0 %v956, 96
  %v1036 = vpop.permute.xlu0 %1035
  %v1038 = vsel %vm184, %v1032, %v1036
  %v1039 = vpack.c.bf16 %v1038, %v1038
  %v1041 = vsel %vm289, %v1039, 0
  %1043 = vmatprep.subr.bf16.mxu0 0
  %1044 = vmatpush1.bf16.msra.mxu0 0
  %1045 = vmatprep.subr.bf16.mxu0 0
  %1046 = vmatpush1.bf16.msra.mxu0 0
  %1047 = vmatprep.subr.bf16.mxu0 0
  %1048 = vmatpush1.bf16.msra.mxu0 0
  %1049 = vmatprep.subr.bf16.mxu0 0
  %1050 = vmatpush1.bf16.msra.mxu0 0
  %1051 = vmatprep.subr.bf16.mxu0 0
  %1052 = vmatpush1.bf16.msra.mxu0 %v284
  %1053 = vmatprep.subr.bf16.mxu0 0
  %1054 = vmatpush1.bf16.msra.mxu0 %v283
  %1055 = vmatprep.subr.bf16.mxu0 0
  %1056 = vmatpush1.bf16.msra.mxu0 %v282
  %1057 = vmatprep.subr.bf16.mxu0 0
  %1058 = vmatpush1.bf16.msra.mxu0 %v281
  %1059 = vmatprep.subr.bf16.mxu0 0
  %1060 = vmatpush2.bf16.msra.mxu0 0
  %1061 = vmatprep.subr.bf16.mxu0 0
  %1062 = vmatpush2.bf16.msra.mxu0 0
  %1063 = vmatprep.subr.bf16.mxu0 0
  %1064 = vmatpush2.bf16.msra.mxu0 0
  %1065 = vmatprep.subr.bf16.mxu0 0
  %1066 = vmatpush2.bf16.msra.mxu0 0
  %1067 = vmatprep.subr.bf16.mxu0 0
  %1068 = vmatpush2.bf16.msra.mxu0 0
  %1069 = vmatprep.subr.bf16.mxu0 0
  %1070 = vmatpush2.bf16.msra.mxu0 0
  %1071 = vmatprep.subr.bf16.mxu0 0
  %1072 = vmatpush2.bf16.msra.mxu0 0
  %1073 = vmatprep.subr.bf16.mxu0 0
  %1074 = vmatpush2.bf16.msra.mxu0 0
  %1075 = vmatprep.mubr.bf16.mxu0 0
  %1076 = vmatmul.mubr.bf16.gmra.mxu0 %v1041
  %v1077 = vpop.f32.mrf.mxu0
  %v1078 = vadd.f32 %v263, %v1077
  %v1079 = vpop.f32.mrf.mxu0
  %v1080 = vpop.f32.mrf.mxu0
  %v1081 = vpop.f32.mrf.mxu0
  %1082 = vdwg.mxu0
  %v1083 = vxor.u32 %v1078, 2147483648
  %v1084 = vmul.f32 %v1083, 1.442695
  %v1085 = vpow.pop %v1084
  %v1086 = vadd.f32 %v1085, 1.0
  %v1087 = vrcp.pop %v1086
  %v1088 = vmul.f32 1.0, %v1087
  %v1089 = vtanh.pop %v1078
  %v1090 = vmul.f32 %v1088, %v950
  %1092 = vrot.lane.b32.xlu0 %v1089, 32
  %v1093 = vpop.permute.xlu0 %1092
  %v1095 = vmul.f32 %v1088, %v1093
  %1097 = vrot.lane.b32.xlu0 %v1095, 32
  %v1098 = vpop.permute.xlu0 %1097
  %v1100 = vadd.f32 %v1090, %v1098
  %v1101 = vtanh.pop %v1100
  %1103 = vrot.lane.b32.xlu0 %v1101, 32
  %v1104 = vpop.permute.xlu0 %1103
  %v1106 = vmul.f32 %v1088, %v1104
  %v1107 = vld [vmem:[#allocation2 + $0x30] sm:$0xff]
  %v1108 = vpack.c.bf16 %v1029, %v1029
  %1110 = vrot.lane.b32.xlu0 %v1108, 64
  %v1111 = vpop.permute.xlu0 %1110
  %v1113 = vsel %vm184, %v1111, 0
  %1115 = vmatprep.subr.bf16.mxu0 0
  %1116 = vmatpush1.bf16.msra.mxu0 0
  %1117 = vmatprep.subr.bf16.mxu0 0
  %1118 = vmatpush1.bf16.msra.mxu0 0
  %1119 = vmatprep.subr.bf16.mxu0 0
  %1120 = vmatpush1.bf16.msra.mxu0 0
  %1121 = vmatprep.subr.bf16.mxu0 0
  %1122 = vmatpush1.bf16.msra.mxu0 0
  %1123 = vmatprep.subr.bf16.mxu0 0
  %1124 = vmatpush1.bf16.msra.mxu0 0
  %1125 = vmatprep.subr.bf16.mxu0 0
  %1126 = vmatpush1.bf16.msra.mxu0 0
  %1127 = vmatprep.subr.bf16.mxu0 0
  %1128 = vmatpush1.bf16.msra.mxu0 %v181
  %1129 = vmatprep.subr.bf16.mxu0 0
  %1130 = vmatpush1.bf16.msra.mxu0 %v180
  %1131 = vmatprep.subr.bf16.mxu0 0
  %1132 = vmatpush2.bf16.msra.mxu0 0
  %1133 = vmatprep.subr.bf16.mxu0 0
  %1134 = vmatpush2.bf16.msra.mxu0 0
  %1135 = vmatprep.subr.bf16.mxu0 0
  %1136 = vmatpush2.bf16.msra.mxu0 0
  %1137 = vmatprep.subr.bf16.mxu0 0
  %1138 = vmatpush2.bf16.msra.mxu0 0
  %1139 = vmatprep.subr.bf16.mxu0 0
  %1140 = vmatpush2.bf16.msra.mxu0 0
  %1141 = vmatprep.subr.bf16.mxu0 0
  %1142 = vmatpush2.bf16.msra.mxu0 0
  %1143 = vmatprep.subr.bf16.mxu0 0
  %1144 = vmatpush2.bf16.msra.mxu0 0
  %1145 = vmatprep.subr.bf16.mxu0 0
  %1146 = vmatpush2.bf16.msra.mxu0 0
  %1147 = vmatprep.mubr.bf16.mxu0 0
  %1148 = vmatmul.mubr.bf16.gmra.mxu0 %v1113
  %v1149 = vpop.f32.mrf.mxu0
  %v1150 = vadd.f32 0.0, %v1149
  %v1151 = vpop.f32.mrf.mxu0
  %v1152 = vpop.f32.mrf.mxu0
  %v1153 = vpop.f32.mrf.mxu0
  %1154 = vdwg.mxu0
  %v1155 = vadd.f32 %v1107, %v1150
  %v1156 = vxor.u32 %v1155, 2147483648
  %v1157 = vmul.f32 %v1156, 1.442695
  %v1158 = vpow.pop %v1157
  %v1159 = vadd.f32 %v1158, 1.0
  %v1160 = vrcp.pop %v1159
  %v1161 = vmul.f32 1.0, %v1160
  %v1162 = vtanh.pop %v1155
  %v1163 = vmul.f32 %v1161, %v1023
  %1165 = vrot.lane.b32.xlu0 %v1162, 32
  %v1166 = vpop.permute.xlu0 %1165
  %v1168 = vmul.f32 %v1161, %v1166
  %1170 = vrot.lane.b32.xlu0 %v1168, 32
  %v1171 = vpop.permute.xlu0 %1170
  %v1173 = vadd.f32 %v1163, %v1171
  %v1174 = vtanh.pop %v1173
  %1176 = vrot.lane.b32.xlu0 %v1174, 32
  %v1177 = vpop.permute.xlu0 %1176
  %v1179 = vmul.f32 %v1161, %v1177
  %1181 = vrot.lane.b32.xlu0 %v1179, 64
  %v1182 = vpop.permute.xlu0 %1181
  %1185 = vrot.lane.b32.xlu0 %v1106, 96
  %v1186 = vpop.permute.xlu0 %1185
  %v1188 = vsel %vm184, %v1182, %v1186
  %v1189 = vpack.c.bf16 %v1188, %v1188
  %v1191 = vsel %vm289, %v1189, 0
  %1193 = vmatprep.subr.bf16.mxu0 0
  %1194 = vmatpush1.bf16.msra.mxu0 0
  %1195 = vmatprep.subr.bf16.mxu0 0
  %1196 = vmatpush1.bf16.msra.mxu0 0
  %1197 = vmatprep.subr.bf16.mxu0 0
  %1198 = vmatpush1.bf16.msra.mxu0 0
  %1199 = vmatprep.subr.bf16.mxu0 0
  %1200 = vmatpush1.bf16.msra.mxu0 0
  %1201 = vmatprep.subr.bf16.mxu0 0
  %1202 = vmatpush1.bf16.msra.mxu0 %v284
  %1203 = vmatprep.subr.bf16.mxu0 0
  %1204 = vmatpush1.bf16.msra.mxu0 %v283
  %1205 = vmatprep.subr.bf16.mxu0 0
  %1206 = vmatpush1.bf16.msra.mxu0 %v282
  %1207 = vmatprep.subr.bf16.mxu0 0
  %1208 = vmatpush1.bf16.msra.mxu0 %v281
  %1209 = vmatprep.subr.bf16.mxu0 0
  %1210 = vmatpush2.bf16.msra.mxu0 0
  %1211 = vmatprep.subr.bf16.mxu0 0
  %1212 = vmatpush2.bf16.msra.mxu0 0
  %1213 = vmatprep.subr.bf16.mxu0 0
  %1214 = vmatpush2.bf16.msra.mxu0 0
  %1215 = vmatprep.subr.bf16.mxu0 0
  %1216 = vmatpush2.bf16.msra.mxu0 0
  %1217 = vmatprep.subr.bf16.mxu0 0
  %1218 = vmatpush2.bf16.msra.mxu0 0
  %1219 = vmatprep.subr.bf16.mxu0 0
  %1220 = vmatpush2.bf16.msra.mxu0 0
  %1221 = vmatprep.subr.bf16.mxu0 0
  %1222 = vmatpush2.bf16.msra.mxu0 0
  %1223 = vmatprep.subr.bf16.mxu0 0
  %1224 = vmatpush2.bf16.msra.mxu0 0
  %1225 = vmatprep.mubr.bf16.mxu0 0
  %1226 = vmatmul.mubr.bf16.gmra.mxu0 %v1191
  %v1227 = vpop.f32.mrf.mxu0
  %v1228 = vadd.f32 %v263, %v1227
  %v1229 = vpop.f32.mrf.mxu0
  %v1230 = vpop.f32.mrf.mxu0
  %v1231 = vpop.f32.mrf.mxu0
  %1232 = vdwg.mxu0
  %v1233 = vxor.u32 %v1228, 2147483648
  %v1234 = vmul.f32 %v1233, 1.442695
  %v1235 = vpow.pop %v1234
  %v1236 = vadd.f32 %v1235, 1.0
  %v1237 = vrcp.pop %v1236
  %v1238 = vmul.f32 1.0, %v1237
  %v1239 = vtanh.pop %v1228
  %v1240 = vmul.f32 %v1238, %v1100
  %1242 = vrot.lane.b32.xlu0 %v1239, 32
  %v1243 = vpop.permute.xlu0 %1242
  %v1245 = vmul.f32 %v1238, %v1243
  %1247 = vrot.lane.b32.xlu0 %v1245, 32
  %v1248 = vpop.permute.xlu0 %1247
  %v1250 = vadd.f32 %v1240, %v1248
  %v1251 = vtanh.pop %v1250
  %1253 = vrot.lane.b32.xlu0 %v1251, 32
  %v1254 = vpop.permute.xlu0 %1253
  %v1256 = vmul.f32 %v1238, %v1254
  %v1257 = vld [vmem:[#allocation2 + $0x38] sm:$0xff]
  %v1258 = vpack.c.bf16 %v1179, %v1179
  %1260 = vrot.lane.b32.xlu0 %v1258, 64
  %v1261 = vpop.permute.xlu0 %1260
  %v1263 = vsel %vm184, %v1261, 0
  %1265 = vmatprep.subr.bf16.mxu0 0
  %1266 = vmatpush1.bf16.msra.mxu0 0
  %1267 = vmatprep.subr.bf16.mxu0 0
  %1268 = vmatpush1.bf16.msra.mxu0 0
  %1269 = vmatprep.subr.bf16.mxu0 0
  %1270 = vmatpush1.bf16.msra.mxu0 0
  %1271 = vmatprep.subr.bf16.mxu0 0
  %1272 = vmatpush1.bf16.msra.mxu0 0
  %1273 = vmatprep.subr.bf16.mxu0 0
  %1274 = vmatpush1.bf16.msra.mxu0 0
  %1275 = vmatprep.subr.bf16.mxu0 0
  %1276 = vmatpush1.bf16.msra.mxu0 0
  %1277 = vmatprep.subr.bf16.mxu0 0
  %1278 = vmatpush1.bf16.msra.mxu0 %v181
  %1279 = vmatprep.subr.bf16.mxu0 0
  %1280 = vmatpush1.bf16.msra.mxu0 %v180
  %1281 = vmatprep.subr.bf16.mxu0 0
  %1282 = vmatpush2.bf16.msra.mxu0 0
  %1283 = vmatprep.subr.bf16.mxu0 0
  %1284 = vmatpush2.bf16.msra.mxu0 0
  %1285 = vmatprep.subr.bf16.mxu0 0
  %1286 = vmatpush2.bf16.msra.mxu0 0
  %1287 = vmatprep.subr.bf16.mxu0 0
  %1288 = vmatpush2.bf16.msra.mxu0 0
  %1289 = vmatprep.subr.bf16.mxu0 0
  %1290 = vmatpush2.bf16.msra.mxu0 0
  %1291 = vmatprep.subr.bf16.mxu0 0
  %1292 = vmatpush2.bf16.msra.mxu0 0
  %1293 = vmatprep.subr.bf16.mxu0 0
  %1294 = vmatpush2.bf16.msra.mxu0 0
  %1295 = vmatprep.subr.bf16.mxu0 0
  %1296 = vmatpush2.bf16.msra.mxu0 0
  %1297 = vmatprep.mubr.bf16.mxu0 0
  %1298 = vmatmul.mubr.bf16.gmra.mxu0 %v1263
  %v1299 = vpop.f32.mrf.mxu0
  %v1300 = vadd.f32 0.0, %v1299
  %v1301 = vpop.f32.mrf.mxu0
  %v1302 = vpop.f32.mrf.mxu0
  %v1303 = vpop.f32.mrf.mxu0
  %1304 = vdwg.mxu0
  %v1305 = vadd.f32 %v1257, %v1300
  %v1306 = vxor.u32 %v1305, 2147483648
  %v1307 = vmul.f32 %v1306, 1.442695
  %v1308 = vpow.pop %v1307
  %v1309 = vadd.f32 %v1308, 1.0
  %v1310 = vrcp.pop %v1309
  %v1311 = vmul.f32 1.0, %v1310
  %v1312 = vtanh.pop %v1305
  %v1313 = vmul.f32 %v1311, %v1173
  %1315 = vrot.lane.b32.xlu0 %v1312, 32
  %v1316 = vpop.permute.xlu0 %1315
  %v1318 = vmul.f32 %v1311, %v1316
  %1320 = vrot.lane.b32.xlu0 %v1318, 32
  %v1321 = vpop.permute.xlu0 %1320
  %v1323 = vadd.f32 %v1313, %v1321
  %v1324 = vtanh.pop %v1323
  %1326 = vrot.lane.b32.xlu0 %v1324, 32
  %v1327 = vpop.permute.xlu0 %1326
  %v1329 = vmul.f32 %v1311, %v1327
  %1331 = vrot.lane.b32.xlu0 %v1329, 64
  %v1332 = vpop.permute.xlu0 %1331
  %1335 = vrot.lane.b32.xlu0 %v1256, 96
  %v1336 = vpop.permute.xlu0 %1335
  %v1338 = vsel %vm184, %v1332, %v1336
  %v1339 = vpack.c.bf16 %v1338, %v1338
  %v1341 = vsel %vm289, %v1339, 0
  %1343 = vmatprep.subr.bf16.mxu0 0
  %1344 = vmatpush1.bf16.msra.mxu0 0
  %1345 = vmatprep.subr.bf16.mxu0 0
  %1346 = vmatpush1.bf16.msra.mxu0 0
  %1347 = vmatprep.subr.bf16.mxu0 0
  %1348 = vmatpush1.bf16.msra.mxu0 0
  %1349 = vmatprep.subr.bf16.mxu0 0
  %1350 = vmatpush1.bf16.msra.mxu0 0
  %1351 = vmatprep.subr.bf16.mxu0 0
  %1352 = vmatpush1.bf16.msra.mxu0 %v284
  %1353 = vmatprep.subr.bf16.mxu0 0
  %1354 = vmatpush1.bf16.msra.mxu0 %v283
  %1355 = vmatprep.subr.bf16.mxu0 0
  %1356 = vmatpush1.bf16.msra.mxu0 %v282
  %1357 = vmatprep.subr.bf16.mxu0 0
  %1358 = vmatpush1.bf16.msra.mxu0 %v281
  %1359 = vmatprep.subr.bf16.mxu0 0
  %1360 = vmatpush2.bf16.msra.mxu0 0
  %1361 = vmatprep.subr.bf16.mxu0 0
  %1362 = vmatpush2.bf16.msra.mxu0 0
  %1363 = vmatprep.subr.bf16.mxu0 0
  %1364 = vmatpush2.bf16.msra.mxu0 0
  %1365 = vmatprep.subr.bf16.mxu0 0
  %1366 = vmatpush2.bf16.msra.mxu0 0
  %1367 = vmatprep.subr.bf16.mxu0 0
  %1368 = vmatpush2.bf16.msra.mxu0 0
  %1369 = vmatprep.subr.bf16.mxu0 0
  %1370 = vmatpush2.bf16.msra.mxu0 0
  %1371 = vmatprep.subr.bf16.mxu0 0
  %1372 = vmatpush2.bf16.msra.mxu0 0
  %1373 = vmatprep.subr.bf16.mxu0 0
  %1374 = vmatpush2.bf16.msra.mxu0 0
  %1375 = vmatprep.mubr.bf16.mxu0 0
  %1376 = vmatmul.mubr.bf16.gmra.mxu0 %v1341
  %v1377 = vpop.f32.mrf.mxu0
  %v1378 = vadd.f32 %v263, %v1377
  %v1379 = vpop.f32.mrf.mxu0
  %v1380 = vpop.f32.mrf.mxu0
  %v1381 = vpop.f32.mrf.mxu0
  %1382 = vdwg.mxu0
  %v1383 = vxor.u32 %v1378, 2147483648
  %v1384 = vmul.f32 %v1383, 1.442695
  %v1385 = vpow.pop %v1384
  %v1386 = vadd.f32 %v1385, 1.0
  %v1387 = vrcp.pop %v1386
  %v1388 = vmul.f32 1.0, %v1387
  %v1389 = vtanh.pop %v1378
  %v1390 = vmul.f32 %v1388, %v1250
  %1392 = vrot.lane.b32.xlu0 %v1389, 32
  %v1393 = vpop.permute.xlu0 %1392
  %v1395 = vmul.f32 %v1388, %v1393
  %1397 = vrot.lane.b32.xlu0 %v1395, 32
  %v1398 = vpop.permute.xlu0 %1397
  %v1400 = vadd.f32 %v1390, %v1398
  %v1401 = vtanh.pop %v1400
  %1403 = vrot.lane.b32.xlu0 %v1401, 32
  %v1404 = vpop.permute.xlu0 %1403
  %v1406 = vmul.f32 %v1388, %v1404
  %v1407 = vld [vmem:[%s6] sm:$0xff]
  %v1408 = vld [vmem:[%s6 + $0x8] sm:$0xff]
  %v1409 = vld [vmem:[%s6 + $0x10] sm:$0xff]
  %v1410 = vld [vmem:[%s6 + $0x18] sm:$0xff]
  %v1411 = vld [vmem:[%s7] sm:$0x1]
  %v1413 = vlaneseq
  %v1414 = vshrl.u32 %v1413, 7
  %v1415 = vsub.s32 0, %v1414
  %v1416 = vrot.slane %v1411, %v1415
  %1419 = vrot.lane.b32.xlu0 %v1406, 64
  %v1420 = vpop.permute.xlu0 %1419
  %v1421 = vsel %vm184, %v1420, 0
  %1423 = vmatprep.subr.mxu0 0.0
  %1424 = vmatpush1.msra.mxu0 0.0
  %1425 = vmatprep.subr.mxu0 0.0
  %1426 = vmatpush1.msra.mxu0 0.0
  %1427 = vmatprep.subr.mxu0 0.0
  %1428 = vmatpush1.msra.mxu0 0.0
  %1429 = vmatprep.subr.mxu0 0.0
  %1430 = vmatpush1.msra.mxu0 0.0
  %1431 = vmatprep.subr.mxu0 0.0
  %1432 = vmatpush1.msra.mxu0 0.0
  %1433 = vmatprep.subr.mxu0 0.0
  %1434 = vmatpush1.msra.mxu0 0.0
  %1435 = vmatprep.subr.mxu0 0.0
  %1436 = vmatpush1.msra.mxu0 0.0
  %1437 = vmatprep.subr.mxu0 0.0
  %1438 = vmatpush1.msra.mxu0 0.0
  %1439 = vmatprep.subr.mxu0 0.0
  %1440 = vmatpush1.msra.mxu0 0.0
  %1441 = vmatprep.subr.mxu0 0.0
  %1442 = vmatpush1.msra.mxu0 0.0
  %1443 = vmatprep.subr.mxu0 0.0
  %1444 = vmatpush1.msra.mxu0 0.0
  %1445 = vmatprep.subr.mxu0 0.0
  %1446 = vmatpush1.msra.mxu0 0.0
  %1447 = vmatprep.subr.mxu0 0.0
  %1448 = vmatpush1.msra.mxu0 %v1410
  %1449 = vmatprep.subr.mxu0 0.0
  %1450 = vmatpush1.msra.mxu0 %v1409
  %1451 = vmatprep.subr.mxu0 0.0
  %1452 = vmatpush1.msra.mxu0 %v1408
  %1453 = vmatprep.subr.mxu0 0.0
  %1454 = vmatpush1.msra.mxu0 %v1407
  %1455 = vmatprep.subr.mxu0 0.0
  %1456 = vmatpush2.msra.mxu0 0.0
  %1457 = vmatprep.subr.mxu0 0.0
  %1458 = vmatpush2.msra.mxu0 0.0
  %1459 = vmatprep.subr.mxu0 0.0
  %1460 = vmatpush2.msra.mxu0 0.0
  %1461 = vmatprep.subr.mxu0 0.0
  %1462 = vmatpush2.msra.mxu0 0.0
  %1463 = vmatprep.subr.mxu0 0.0
  %1464 = vmatpush2.msra.mxu0 0.0
  %1465 = vmatprep.subr.mxu0 0.0
  %1466 = vmatpush2.msra.mxu0 0.0
  %1467 = vmatprep.subr.mxu0 0.0
  %1468 = vmatpush2.msra.mxu0 0.0
  %1469 = vmatprep.subr.mxu0 0.0
  %1470 = vmatpush2.msra.mxu0 0.0
  %1471 = vmatprep.subr.mxu0 0.0
  %1472 = vmatpush2.msra.mxu0 0.0
  %1473 = vmatprep.subr.mxu0 0.0
  %1474 = vmatpush2.msra.mxu0 0.0
  %1475 = vmatprep.subr.mxu0 0.0
  %1476 = vmatpush2.msra.mxu0 0.0
  %1477 = vmatprep.subr.mxu0 0.0
  %1478 = vmatpush2.msra.mxu0 0.0
  %1479 = vmatprep.subr.mxu0 0.0
  %1480 = vmatpush2.msra.mxu0 0.0
  %1481 = vmatprep.subr.mxu0 0.0
  %1482 = vmatpush2.msra.mxu0 0.0
  %1483 = vmatprep.subr.mxu0 0.0
  %1484 = vmatpush2.msra.mxu0 0.0
  %1485 = vmatprep.subr.mxu0 0.0
  %1486 = vmatpush2.msra.mxu0 0.0
  %1487 = vmatprep.mubr.f32.mxu0 0.0
  %1488 = vmatmul.mubr.f32.gmra.mxu0 %v1421
  %v1489 = vpop.f32.mrf.mxu0
  %v1490 = vadd.f32 %v1416, %v1489
  %v1491 = vpop.f32.mrf.mxu0
  %1492 = vdwg.mxu0
  %1493 = vst [vmem:[%s8] sm:$0xff] %v1490
  %1495 = vrot.lane.b32.xlu0 %v1400, 96
  %v1496 = vpop.permute.xlu0 %1495
  %1498 = vst.msk [vmem:[%s9] sm:$0xff] %vm184, %v1496
  // Predicated region
  $region34: #{lstm_model_forward.1} parent=0 // pred_check
    _
  $region35: #{lstm_model_forward.1} parent=0 // pred_check_branch
    %1500 = sbr.rel (0) target = $region37
  $region36: #{lstm_model_forward.1} parent=0 // pred_region
    _
  $region37: #{lstm_model_forward.1} parent=0 // pred_fallthru
    _
  // Predicated region
  $region38: #{lstm_model_forward.1} parent=0 // pred_check
    _
  $region39: #{lstm_model_forward.1} parent=0 // pred_check_branch
    %1502 = sbr.rel (0) target = $region41
  $region40: #{lstm_model_forward.1} parent=0 // pred_region
    _
  $region41: #{lstm_model_forward.1} parent=0 // pred_fallthru
    _
  // Predicated region
  $region42: #{lstm_model_forward.1} parent=0 // pred_check
    _
  $region43: #{lstm_model_forward.1} parent=0 // pred_check_branch
    %1504 = sbr.rel (0) target = $region45
  $region44: #{lstm_model_forward.1} parent=0 // pred_region
    _
  $region45: #{lstm_model_forward.1} parent=0 // pred_fallthru
    _
  // Predicated region
  $region46: #{lstm_model_forward.1} parent=0 // pred_check
    _
  $region47: #{lstm_model_forward.1} parent=0 // pred_check_branch
    %1506 = sbr.rel (0) target = $region49
  $region48: #{lstm_model_forward.1} parent=0 // pred_region
    _
  $region49: #{lstm_model_forward.1} parent=0 // pred_fallthru
    _

</llo_original>
